<compile_context>
chip_gen: v5e
topology: v5e:2x2
jax: 0.10.0
libtpu: 0.0.40
codegen_flags: <defaults>
</compile_context>

<pallas_src>
import functools

import jax
import jax.numpy as jnp
from jax.experimental import pallas as pl
from jax.experimental.pallas import tpu as pltpu


# ------------------------------- helpers ----------------------------------- #

def _round_up(x, m):
    return ((x + m - 1) // m) * m


def _cdiv(a, b):
    return (a + b - 1) // b


def _sinc(theta):
    """sin(theta)/theta with Taylor fallback near 0 (matches pytorch3d eps)."""
    small = theta < 1e-6
    theta_safe = jnp.where(small, 1.0, theta)
    return jnp.where(small, 1.0 - theta * theta / 6.0, jnp.sin(theta) / theta_safe)


def _det3(u, v, w):
    """Determinant of the 3x3 matrix whose COLUMNS are u, v, w (triple product)."""
    return (u[0] * (v[1] * w[2] - v[2] * w[1])
            + u[1] * (v[2] * w[0] - v[0] * w[2])
            + u[2] * (v[0] * w[1] - v[1] * w[0]))


def _vmem_capacity_bytes():
    try:
        cap = getattr(pltpu.get_tpu_info(), "vmem_capacity_bytes", None)
        if cap:
            return int(cap)
    except Exception:
        pass
    return 64 * 1024 * 1024        # conservative fallback (v7x per-core VMEM)


# ----------------------------- Pallas kernel ------------------------------- #

def autoencoder_kernel(x_ref, w_ref, b_ref, out_ref, acc_ref, *, d_total, tk):
    """Grid = (batch tiles [parallel], K tiles [arbitrary, innermost])."""
    k = pl.program_id(1)
    n_k = pl.num_programs(1)

    @pl.when(k == 0)
    def _():
        acc_ref[...] = jnp.zeros_like(acc_ref)

    # f32 tile from HBM; cast to bf16 on the VPU (free: kernel is HBM-bound).
    x = x_ref[...]                                        # (TB, TK) f32
    if d_total % tk != 0:
        # Static-only branch: zero the tail columns of the final partial K tile
        # so garbage VMEM never reaches the accumulator (weight tail is
        # zero-padded in the wrapper, so 0 * 0 = 0).
        rem = d_total - k * tk
        col = jax.lax.broadcasted_iota(jnp.int32, x.shape, 1)
        x = jnp.where(col < rem, x, 0.0)
    x_bf = x.astype(jnp.bfloat16)

    # latent^T partial sum: (16, TK) . (TB, TK)^T -> (16, TB), lane-major batch.
    acc_ref[...] += jax.lax.dot_general(
        w_ref[...], x_bf,
        dimension_numbers=(((1,), (1,)), ((), ())),
        preferred_element_type=jnp.float32)

    @pl.when(k == n_k - 1)
    def _():
        latT = acc_ref[...] + b_ref[...]                  # (16, TB) f32

        # latent rows: [lcx lcy lcz rcx rcy rcz l_ax l_ay r_ax r_ay 0...]
        lcx, lcy, lcz = latT[0:1], latT[1:2], latT[2:3]
        rcx, rcy, rcz = latT[3:4], latT[4:5], latT[5:6]
        l_ax, l_ay = latT[6:7], latT[7:8]
        r_ax, r_ay = latT[8:9], latT[9:10]

        # apply_eyeball_rotation([0,0,1], 0, (ax, ay, 0)) == 3rd row of Rodrigues:
        #   gaze = [-ay*sinc(th), ax*sinc(th), cos(th)],  th = |(ax, ay)|
        th_l = jnp.sqrt(l_ax * l_ax + l_ay * l_ay)
        sc_l = _sinc(th_l)
        lgx, lgy, lgz = -l_ay * sc_l, l_ax * sc_l, jnp.cos(th_l)

        th_r = jnp.sqrt(r_ax * r_ax + r_ay * r_ay)
        sc_r = _sinc(th_r)
        rgx, rgy, rgz = -r_ay * sc_r, r_ax * sc_r, jnp.cos(th_r)

        # lr_cross = right_gaze x left_gaze
        cx = rgy * lgz - rgz * lgy
        cy = rgz * lgx - rgx * lgz
        cz = rgx * lgy - rgy * lgx

        # Solve M @ t = (r_centre - l_centre), M columns = [lg, -rg, lr_cross]
        a = (lgx, lgy, lgz)
        b = (-rgx, -rgy, -rgz)
        c = (cx, cy, cz)
        d = (rcx - lcx, rcy - lcy, rcz - lcz)

        det = _det3(a, b, c)
        inv_det = 1.0 / det                               # no singularity guard (see TODO)
        t0 = _det3(d, b, c) * inv_det                     # lin_solve[:, 0]
        t1 = _det3(a, d, c) * inv_det                     # lin_solve[:, 1]

        gplx, gply, gplz = lcx + t0 * lgx, lcy + t0 * lgy, lcz + t0 * lgz
        gprx, gpry, gprz = rcx + t1 * rgx, rcy + t1 * rgy, rcz + t1 * rgz
        gpmx, gpmy, gpmz = 0.5 * (gplx + gprx), 0.5 * (gply + gpry), 0.5 * (gplz + gprz)
        dx, dy, dz = gplx - gprx, gply - gpry, gplz - gprz
        dist = jnp.sqrt(dx * dx + dy * dy + dz * dz)

        # single (16, TB) geometry block -> one unmasked full-tile store
        geo = jnp.concatenate(
            [lgx, lgy, lgz, rgx, rgy, rgz,
             gplx, gply, gplz, gprx, gpry, gprz,
             gpmx, gpmy, gpmz, dist], axis=0)             # (16, TB)

        out_ref[0:16, :] = latT      # rows 0..9 latent, 10..15 zero padding
        out_ref[16:32, :] = geo      # rows 16..31 geometry


# ------------------------------ JAX wrapper -------------------------------- #

def autoencoder_forward(x_nchw, w_enc, b_enc, *, tb_cap=512, tk_cap=None):
    """x_nchw: (B, C, H, W) f32, w_enc: (D, 10), b_enc: (1, 10) or (10,)."""
    B = x_nchw.shape[0]
    x_flat = x_nchw.reshape(B, -1)            # metadata-only under jit; x stays f32 in HBM
    D = x_flat.shape[1]
    n_lat = w_enc.shape[-1]                   # 10

    vmem_cap = _vmem_capacity_bytes()
    vmem_budget = int(0.55 * vmem_cap)        # tile-sizing budget (leave headroom)

    # ---- batch tile (lane axis of packed output): 128-multiple, or full B ----
    # Each x step should move >= ~2 MiB of HBM for DMA efficiency.
    tb_cap_eff = max(tb_cap, _round_up(max(1, (2 * 1024 * 1024) // (4 * D)), 128))
    if B <= 128:
        TB = _round_up(B, 8)
        n_b = 1
    else:
        n_b = max(2, _cdiv(B, tb_cap_eff))    # >=2 steps so both v7x TCs get work
        TB = _round_up(_cdiv(B, n_b), 128)
        n_b = _cdiv(B, TB)
    Bp = n_b * TB                             # padded lanes only on the (small) output

    # ---- K tile over D: bound the f32 x double-buffer by the VMEM budget ----
    x_buf_budget = int(0.45 * vmem_budget)
    tk_max = max(128, (x_buf_budget // (2 * TB * 4)) // 128 * 128)
    if tk_cap is not None:
        tk_max = max(128, min(tk_max, (tk_cap // 128) * 128))
    if D <= tk_max:
        TK, n_k = D, 1
    else:
        TK, n_k = tk_max, _cdiv(D, tk_max)
    Dk = n_k * TK

    # Small resident-ish operands (only these are padded; x never is).
    w_t = jnp.pad(w_enc.astype(jnp.bfloat16).T, ((0, 16 - n_lat), (0, Dk - D)))   # (16, Dk)
    b_t = jnp.pad(jnp.asarray(b_enc, jnp.float32).reshape(-1, 1),
                  ((0, 16 - n_lat), (0, 0)))                                       # (16, 1)

    # Per-generation VMEM limit: enough for our buffers (+2x headroom), capped
    # well below the physical capacity reported for this chip.
    needed = (2 * TB * TK * 4          # x double buffer (f32)
              + 2 * 16 * TK * 2        # weight double buffer (bf16)
              + 2 * 16 * 4             # bias
              + 2 * 32 * TB * 4        # packed output double buffer
              + 16 * TB * 4)           # f32 accumulator scratch
    vmem_limit = min(int(0.8 * vmem_cap), max(32 * 1024 * 1024, 2 * needed))

    cost = pl.CostEstimate(
        flops=2 * n_b * TB * Dk * 16,
        transcendentals=6 * n_b * TB,
        bytes_accessed=B * D * 4 + n_b * 16 * Dk * 2 + 16 * 4 + 32 * Bp * 4,
    )

    kernel = functools.partial(autoencoder_kernel, d_total=D, tk=TK)

    outT = pl.pallas_call(
        kernel,
        out_shape=jax.ShapeDtypeStruct((32, Bp), jnp.float32),
        grid_spec=pltpu.PrefetchScalarGridSpec(
            num_scalar_prefetch=0,
            grid=(n_b, n_k),
            in_specs=[
                pl.BlockSpec((TB, TK), lambda i, k: (i, k)),   # x: streamed f32 tiles
                pl.BlockSpec((16, TK), lambda i, k: (0, k)),   # weight (bf16)
                pl.BlockSpec((16, 1), lambda i, k: (0, 0)),    # bias (resident)
            ],
            out_specs=pl.BlockSpec((32, TB), lambda i, k: (0, i)),
            scratch_shapes=[pltpu.VMEM((16, TB), jnp.float32)],  # latent^T accumulator
        ),
        compiler_params=pltpu.CompilerParams(
            dimension_semantics=("parallel", "arbitrary"),
            vmem_limit_bytes=vmem_limit,
        ),
        cost_estimate=cost,
    )(x_flat, w_t, b_t)

    packed = outT[:, :B].T                                 # (B, 32) f32
    latent = packed[:, 0:n_lat]
    lg, rg = packed[:, 16:19], packed[:, 19:22]
    gpl, gpr = packed[:, 22:25], packed[:, 25:28]
    gpm, dist = packed[:, 28:31], packed[:, 31]

    return {
        'l_eyeball_centre': latent[:, None, 0:3],          # (B, 1, 3)
        'r_eyeball_centre': latent[:, None, 3:6],          # (B, 1, 3)
        'left_eye_rotation': latent[:, 6:8],               # (B, 2)
        'right_eye_rotation': latent[:, 8:10],             # (B, 2)
        'left_gaze': lg[:, None, :],                       # (B, 1, 3)
        'right_gaze': rg[:, None, :],                      # (B, 1, 3)
        'gaze_point_l': gpl[:, None, :],                   # (B, 1, 3)
        'gaze_point_r': gpr[:, None, :],                   # (B, 1, 3)
        'gaze_point_mid': gpm[:, None, :],                 # (B, 1, 3)
        'gaze_point_dist': dist,                           # (B,)
    }


# --------------------------- pure-JAX reference ---------------------------- #

def _axis_angle_to_matrix(aa):
    """pytorch3d axis_angle_to_matrix (via quaternion)."""
    angle = jnp.linalg.norm(aa, axis=-1, keepdims=True)
    half = angle * 0.5
    small = angle < 1e-6
    angle_safe = jnp.where(small, 1.0, angle)
    sin_half_over_angle = jnp.where(small, 0.5 - angle * angle / 48.0,
                                    jnp.sin(half) / angle_safe)
    quat = jnp.concatenate([jnp.cos(half), aa * sin_half_over_angle], axis=-1)
    r, i, j, k = quat[:, 0], quat[:, 1], quat[:, 2], quat[:, 3]
    two_s = 2.0 / jnp.sum(quat * quat, axis=-1)
    R = jnp.stack([
        jnp.stack([1 - two_s * (j * j + k * k), two_s * (i * j - k * r), two_s * (i * k + j * r)], -1),
        jnp.stack([two_s * (i * j + k * r), 1 - two_s * (i * i + k * k), two_s * (j * k - i * r)], -1),
        jnp.stack([two_s * (i * k - j * r), two_s * (j * k + i * r), 1 - two_s * (i * i + j * j)], -1),
    ], axis=1)
    return R


def reference_forward(x_flat, w_enc, b_enc):
    B = x_flat.shape[0]
    latent = jnp.dot(x_flat, w_enc, precision=jax.lax.Precision.HIGHEST) + b_enc.reshape(1, -1)
    l_c = latent[:, None, 0:3]
    r_c = latent[:, None, 3:6]
    eyeball = jnp.broadcast_to(jnp.array([[[0.0, 0.0, 1.0]]]), (B, 1, 3))

    def apply_rot(rot):
        aa = jnp.concatenate([rot, jnp.zeros_like(rot[:, 0:1])], axis=1)
        R = _axis_angle_to_matrix(aa)
        return jnp.einsum('bvl,bli->bvi', eyeball, R)

    lg = apply_rot(latent[:, 6:8])
    rg = apply_rot(latent[:, 8:10])
    cross = jnp.cross(rg, lg, axis=2)
    M = jnp.concatenate([lg, -rg, cross], axis=1).transpose(0, 2, 1)
    rhs = (r_c - l_c).transpose(0, 2, 1)
    sol = jnp.linalg.solve(M, rhs)
    gpl = l_c + sol[:, 0:1, :] * lg
    gpr = r_c + sol[:, 1:2, :] * rg
    gpm = (gpl + gpr) / 2
    dist = jnp.linalg.norm(gpl - gpr, axis=2)[:, 0]
    return {
        'l_eyeball_centre': l_c, 'r_eyeball_centre': r_c,
        'left_eye_rotation': latent[:, 6:8], 'right_eye_rotation': latent[:, 8:10],
        'left_gaze': lg, 'right_gaze': rg,
        'gaze_point_l': gpl, 'gaze_point_r': gpr,
        'gaze_point_mid': gpm, 'gaze_point_dist': dist,
    }


# ---------------------------------- main ----------------------------------- #

if __name__ == "__main__":
    key = jax.random.PRNGKey(0)
    k1, k2, k3, k4 = jax.random.split(key, 4)

    names = ['l_eyeball_centre', 'r_eyeball_centre',
             'left_eye_rotation', 'right_eye_rotation',
             'left_gaze', 'right_gaze',
             'gaze_point_l', 'gaze_point_r', 'gaze_point_mid', 'gaze_point_dist']

    def check(out, ref, rtol, atol, tag):
        for name in names:
            assert out[name].shape == ref[name].shape, (tag, name)
            assert jnp.allclose(out[name], ref[name], rtol=rtol, atol=atol), (tag, name)

    # ---- test 1: tiny config (single tile, no K tiling) ----
    B, C, H, W = 2, 4, 16, 16
    x = jax.random.normal(k1, (B, C, H, W), dtype=jnp.float32)
    D = C * H * W
    w_enc = 0.02 * jax.random.normal(k2, (D, 10), dtype=jnp.float32)
    b_enc = (jnp.arange(10, dtype=jnp.float32) * 0.1).reshape(1, 10)

    out = autoencoder_forward(x, w_enc, b_enc)
    jax.block_until_ready(out)

    # Reference uses the same bf16 quantisation as the kernel's MXU path
    # (f32 accumulation on both sides).
    ref = reference_forward(x.astype(jnp.bfloat16).astype(jnp.float32).reshape(B, -1),
                            w_enc.astype(jnp.bfloat16).astype(jnp.float32), b_enc)
    check(out, ref, 2e-3, 1e-3, "small")

    # ---- test 2: forced tiling (partial batch tile + K accumulation + tail mask) ----
    B2, C2, H2, W2 = 200, 4, 25, 25          # D2 = 2500: not a multiple of TK
    x2 = jax.random.normal(k3, (B2, C2, H2, W2), dtype=jnp.float32)
    D2 = C2 * H2 * W2
    w2 = 0.005 * jax.random.normal(k4, (D2, 10), dtype=jnp.float32)
    w2 = w2.at[:, 6:10].multiply(0.05)       # keep gaze solve well-conditioned across the batch
    b2 = (jnp.arange(10, dtype=jnp.float32) * 0.1).reshape(1, 10)

    out2 = autoencoder_forward(x2, w2, b2, tb_cap=128, tk_cap=1024)
    jax.block_until_ready(out2)
    ref2 = reference_forward(x2.astype(jnp.bfloat16).astype(jnp.float32).reshape(B2, -1),
                             w2.astype(jnp.bfloat16).astype(jnp.float32), b2)
    check(out2, ref2, 2e-3, 2e-3, "tiled")

    print("KERNEL_OK")
</pallas_src>

<mosaic_0001>
module attributes {stable_mosaic.version = 11 : i64} {
  func.func @autoencoder_kernel(%arg0: i32, %arg1: i32, %arg2: memref<8x1024xf32, #tpu.memory_space<vmem>>, %arg3: memref<16x1024xbf16, #tpu.memory_space<vmem>>, %arg4: memref<16x1xf32, #tpu.memory_space<vmem>>, %arg5: memref<32x8xf32, #tpu.memory_space<vmem>>, %arg6: memref<16x8xf32, #tpu.memory_space<vmem>>) attributes {dimension_semantics = [#tpu.dimension_semantics<parallel>, #tpu.dimension_semantics<arbitrary>], iteration_bounds = array<i64: 1, 1>, scalar_prefetch = 0 : i64, scratch_operands = 1 : i64, tpu.core_type = #tpu.core_type<tc>, window_params = [{transform_indices = @transform_0, window_bounds = array<i64: 8, 1024>}, {transform_indices = @transform_1, window_bounds = array<i64: 16, 1024>}, {pipeline_mode = #tpu.pipeline_mode<synchronous>, transform_indices = @transform_2, window_bounds = array<i64: 16, 1>}, {transform_indices = @transform_3, window_bounds = array<i64: 32, 8>}]} {
    %c0_i32 = arith.constant 0 : i32
    %0 = arith.cmpi eq, %arg1, %c0_i32 : i32
    %1 = arith.extui %0 : i1 to i32
    %c0_i32_0 = arith.constant 0 : i32
    %2 = arith.cmpi ne, %1, %c0_i32_0 : i32
    scf.if %2 {
      %cst_10 = arith.constant 0.000000e+00 : f32
      %13 = vector.broadcast %cst_10 : f32 to vector<16x8xf32>
      %c0_11 = arith.constant 0 : index
      %c0_12 = arith.constant 0 : index
      %14 = vector.load %arg6[%c0_11, %c0_12] : memref<16x8xf32, #tpu.memory_space<vmem>>, vector<16x8xf32>
      tpu.vector_store %arg6[%c0_11, %c0_12], %13 {strides = array<i32>} : memref<16x8xf32, #tpu.memory_space<vmem>>, vector<16x8xf32>,
    } else {
    }
    %c0 = arith.constant 0 : index
    %c0_1 = arith.constant 0 : index
    %3 = vector.load %arg2[%c0, %c0_1] : memref<8x1024xf32, #tpu.memory_space<vmem>>, vector<8x1024xf32>
    %4 = arith.truncf %3 : vector<8x1024xf32> to vector<8x1024xbf16>
    %c0_2 = arith.constant 0 : index
    %c0_3 = arith.constant 0 : index
    %5 = vector.load %arg6[%c0_2, %c0_3] : memref<16x8xf32, #tpu.memory_space<vmem>>, vector<16x8xf32>
    %c0_4 = arith.constant 0 : index
    %c0_5 = arith.constant 0 : index
    %6 = vector.load %arg3[%c0_4, %c0_5] : memref<16x1024xbf16, #tpu.memory_space<vmem>>, vector<16x1024xbf16>
    %cst = arith.constant dense<0.000000e+00> : vector<16x8xf32>
    %7 = tpu.matmul %6, %4, %cst {dimension_numbers = #tpu.dot_dimension_numbers<[1], [1], [0], [0], [0, 0, 1, 0], [], []>} : vector<16x1024xbf16>, vector<8x1024xbf16>, vector<16x8xf32> -> vector<16x8xf32>
    %8 = arith.addf %5, %7 : vector<16x8xf32>
    %c0_6 = arith.constant 0 : index
    %c0_7 = arith.constant 0 : index
    %9 = vector.load %arg6[%c0_6, %c0_7] : memref<16x8xf32, #tpu.memory_space<vmem>>, vector<16x8xf32>
    tpu.vector_store %arg6[%c0_6, %c0_7], %8 {strides = array<i32>} : memref<16x8xf32, #tpu.memory_space<vmem>>, vector<16x8xf32>,
    %c0_i32_8 = arith.constant 0 : i32
    %10 = arith.cmpi eq, %arg1, %c0_i32_8 : i32
    %11 = arith.extui %10 : i1 to i32
    %c0_i32_9 = arith.constant 0 : i32
    %12 = arith.cmpi ne, %11, %c0_i32_9 : i32
    scf.if %12 {
      %c0_10 = arith.constant 0 : index
      %c0_11 = arith.constant 0 : index
      %13 = vector.load %arg6[%c0_10, %c0_11] : memref<16x8xf32, #tpu.memory_space<vmem>>, vector<16x8xf32>
      %c0_12 = arith.constant 0 : index
      %c0_13 = arith.constant 0 : index
      %14 = vector.load %arg4[%c0_12, %c0_13] : memref<16x1xf32, #tpu.memory_space<vmem>>, vector<16x1xf32>
      %15 = vector.broadcast %14 : vector<16x1xf32> to vector<16x8xf32>
      %16 = arith.addf %13, %15 : vector<16x8xf32>
      %17 = vector.extract_strided_slice %16 {offsets = [0, 0], sizes = [1, 8], strides = [1, 1]} : vector<16x8xf32> to vector<1x8xf32>
      %18 = vector.extract_strided_slice %16 {offsets = [1, 0], sizes = [1, 8], strides = [1, 1]} : vector<16x8xf32> to vector<1x8xf32>
      %19 = vector.extract_strided_slice %16 {offsets = [2, 0], sizes = [1, 8], strides = [1, 1]} : vector<16x8xf32> to vector<1x8xf32>
      %20 = vector.extract_strided_slice %16 {offsets = [3, 0], sizes = [1, 8], strides = [1, 1]} : vector<16x8xf32> to vector<1x8xf32>
      %21 = vector.extract_strided_slice %16 {offsets = [4, 0], sizes = [1, 8], strides = [1, 1]} : vector<16x8xf32> to vector<1x8xf32>
      %22 = vector.extract_strided_slice %16 {offsets = [5, 0], sizes = [1, 8], strides = [1, 1]} : vector<16x8xf32> to vector<1x8xf32>
      %23 = vector.extract_strided_slice %16 {offsets = [6, 0], sizes = [1, 8], strides = [1, 1]} : vector<16x8xf32> to vector<1x8xf32>
      %24 = vector.extract_strided_slice %16 {offsets = [7, 0], sizes = [1, 8], strides = [1, 1]} : vector<16x8xf32> to vector<1x8xf32>
      %25 = vector.extract_strided_slice %16 {offsets = [8, 0], sizes = [1, 8], strides = [1, 1]} : vector<16x8xf32> to vector<1x8xf32>
      %26 = vector.extract_strided_slice %16 {offsets = [9, 0], sizes = [1, 8], strides = [1, 1]} : vector<16x8xf32> to vector<1x8xf32>
      %27 = arith.mulf %23, %23 : vector<1x8xf32>
      %28 = arith.mulf %24, %24 : vector<1x8xf32>
      %29 = arith.addf %27, %28 : vector<1x8xf32>
      %30 = math.sqrt %29 : vector<1x8xf32>
      %cst_14 = arith.constant 9.99999997E-7 : f32
      %31 = vector.broadcast %cst_14 : f32 to vector<1x8xf32>
      %32 = arith.cmpf olt, %30, %31 : vector<1x8xf32>
      %cst_15 = arith.constant 1.000000e+00 : f32
      %33 = vector.broadcast %cst_15 : f32 to vector<1x8xf32>
      %34 = arith.select %32, %33, %30 : vector<1x8xi1>, vector<1x8xf32>
      %35 = arith.mulf %30, %30 : vector<1x8xf32>
      %cst_16 = arith.constant 6.000000e+00 : f32
      %36 = vector.broadcast %cst_16 : f32 to vector<1x8xf32>
      %37 = arith.divf %35, %36 : vector<1x8xf32>
      %cst_17 = arith.constant 1.000000e+00 : f32
      %38 = vector.broadcast %cst_17 : f32 to vector<1x8xf32>
      %39 = arith.subf %38, %37 : vector<1x8xf32>
      %40 = math.sin %30 : vector<1x8xf32>
      %41 = arith.divf %40, %34 : vector<1x8xf32>
      %42 = arith.select %32, %39, %41 : vector<1x8xi1>, vector<1x8xf32>
      %cst_18 = arith.constant 0.000000e+00 : f32
      %43 = vector.broadcast %cst_18 : f32 to vector<1x8xf32>
      %44 = arith.subf %43, %24 : vector<1x8xf32>
      %45 = arith.mulf %44, %42 : vector<1x8xf32>
      %46 = arith.mulf %23, %42 : vector<1x8xf32>
      %47 = math.cos %30 : vector<1x8xf32>
      %48 = arith.mulf %25, %25 : vector<1x8xf32>
      %49 = arith.mulf %26, %26 : vector<1x8xf32>
      %50 = arith.addf %48, %49 : vector<1x8xf32>
      %51 = math.sqrt %50 : vector<1x8xf32>
      %cst_19 = arith.constant 9.99999997E-7 : f32
      %52 = vector.broadcast %cst_19 : f32 to vector<1x8xf32>
      %53 = arith.cmpf olt, %51, %52 : vector<1x8xf32>
      %cst_20 = arith.constant 1.000000e+00 : f32
      %54 = vector.broadcast %cst_20 : f32 to vector<1x8xf32>
      %55 = arith.select %53, %54, %51 : vector<1x8xi1>, vector<1x8xf32>
      %56 = arith.mulf %51, %51 : vector<1x8xf32>
      %cst_21 = arith.constant 6.000000e+00 : f32
      %57 = vector.broadcast %cst_21 : f32 to vector<1x8xf32>
      %58 = arith.divf %56, %57 : vector<1x8xf32>
      %cst_22 = arith.constant 1.000000e+00 : f32
      %59 = vector.broadcast %cst_22 : f32 to vector<1x8xf32>
      %60 = arith.subf %59, %58 : vector<1x8xf32>
      %61 = math.sin %51 : vector<1x8xf32>
      %62 = arith.divf %61, %55 : vector<1x8xf32>
      %63 = arith.select %53, %60, %62 : vector<1x8xi1>, vector<1x8xf32>
      %cst_23 = arith.constant 0.000000e+00 : f32
      %64 = vector.broadcast %cst_23 : f32 to vector<1x8xf32>
      %65 = arith.subf %64, %26 : vector<1x8xf32>
      %66 = arith.mulf %65, %63 : vector<1x8xf32>
      %67 = arith.mulf %25, %63 : vector<1x8xf32>
      %68 = math.cos %51 : vector<1x8xf32>
      %69 = arith.mulf %67, %47 : vector<1x8xf32>
      %70 = arith.mulf %68, %46 : vector<1x8xf32>
      %71 = arith.subf %69, %70 : vector<1x8xf32>
      %72 = arith.mulf %68, %45 : vector<1x8xf32>
      %73 = arith.mulf %66, %47 : vector<1x8xf32>
      %74 = arith.subf %72, %73 : vector<1x8xf32>
      %75 = arith.mulf %66, %46 : vector<1x8xf32>
      %76 = arith.mulf %67, %45 : vector<1x8xf32>
      %77 = arith.subf %75, %76 : vector<1x8xf32>
      %cst_24 = arith.constant 0.000000e+00 : f32
      %78 = vector.broadcast %cst_24 : f32 to vector<1x8xf32>
      %79 = arith.subf %78, %66 : vector<1x8xf32>
      %cst_25 = arith.constant 0.000000e+00 : f32
      %80 = vector.broadcast %cst_25 : f32 to vector<1x8xf32>
      %81 = arith.subf %80, %67 : vector<1x8xf32>
      %cst_26 = arith.constant 0.000000e+00 : f32
      %82 = vector.broadcast %cst_26 : f32 to vector<1x8xf32>
      %83 = arith.subf %82, %68 : vector<1x8xf32>
      %84 = arith.subf %20, %17 : vector<1x8xf32>
      %85 = arith.subf %21, %18 : vector<1x8xf32>
      %86 = arith.subf %22, %19 : vector<1x8xf32>
      %87 = arith.mulf %81, %77 : vector<1x8xf32>
      %88 = arith.mulf %83, %74 : vector<1x8xf32>
      %89 = arith.subf %87, %88 : vector<1x8xf32>
      %90 = arith.mulf %45, %89 : vector<1x8xf32>
      %91 = arith.mulf %83, %71 : vector<1x8xf32>
      %92 = arith.mulf %79, %77 : vector<1x8xf32>
      %93 = arith.subf %91, %92 : vector<1x8xf32>
      %94 = arith.mulf %46, %93 : vector<1x8xf32>
      %95 = arith.addf %90, %94 : vector<1x8xf32>
      %96 = arith.mulf %79, %74 : vector<1x8xf32>
      %97 = arith.mulf %81, %71 : vector<1x8xf32>
      %98 = arith.subf %96, %97 : vector<1x8xf32>
      %99 = arith.mulf %47, %98 : vector<1x8xf32>
      %100 = arith.addf %95, %99 : vector<1x8xf32>
      %cst_27 = arith.constant 1.000000e+00 : f32
      %101 = vector.broadcast %cst_27 : f32 to vector<1x8xf32>
      %102 = arith.divf %101, %100 : vector<1x8xf32>
      %103 = arith.mulf %81, %77 : vector<1x8xf32>
      %104 = arith.mulf %83, %74 : vector<1x8xf32>
      %105 = arith.subf %103, %104 : vector<1x8xf32>
      %106 = arith.mulf %84, %105 : vector<1x8xf32>
      %107 = arith.mulf %83, %71 : vector<1x8xf32>
      %108 = arith.mulf %79, %77 : vector<1x8xf32>
      %109 = arith.subf %107, %108 : vector<1x8xf32>
      %110 = arith.mulf %85, %109 : vector<1x8xf32>
      %111 = arith.addf %106, %110 : vector<1x8xf32>
      %112 = arith.mulf %79, %74 : vector<1x8xf32>
      %113 = arith.mulf %81, %71 : vector<1x8xf32>
      %114 = arith.subf %112, %113 : vector<1x8xf32>
      %115 = arith.mulf %86, %114 : vector<1x8xf32>
      %116 = arith.addf %111, %115 : vector<1x8xf32>
      %117 = arith.mulf %116, %102 : vector<1x8xf32>
      %118 = arith.mulf %85, %77 : vector<1x8xf32>
      %119 = arith.mulf %86, %74 : vector<1x8xf32>
      %120 = arith.subf %118, %119 : vector<1x8xf32>
      %121 = arith.mulf %45, %120 : vector<1x8xf32>
      %122 = arith.mulf %86, %71 : vector<1x8xf32>
      %123 = arith.mulf %84, %77 : vector<1x8xf32>
      %124 = arith.subf %122, %123 : vector<1x8xf32>
      %125 = arith.mulf %46, %124 : vector<1x8xf32>
      %126 = arith.addf %121, %125 : vector<1x8xf32>
      %127 = arith.mulf %84, %74 : vector<1x8xf32>
      %128 = arith.mulf %85, %71 : vector<1x8xf32>
      %129 = arith.subf %127, %128 : vector<1x8xf32>
      %130 = arith.mulf %47, %129 : vector<1x8xf32>
      %131 = arith.addf %126, %130 : vector<1x8xf32>
      %132 = arith.mulf %131, %102 : vector<1x8xf32>
      %133 = arith.mulf %117, %45 : vector<1x8xf32>
      %134 = arith.addf %17, %133 : vector<1x8xf32>
      %135 = arith.mulf %117, %46 : vector<1x8xf32>
      %136 = arith.addf %18, %135 : vector<1x8xf32>
      %137 = arith.mulf %117, %47 : vector<1x8xf32>
      %138 = arith.addf %19, %137 : vector<1x8xf32>
      %139 = arith.mulf %132, %66 : vector<1x8xf32>
      %140 = arith.addf %20, %139 : vector<1x8xf32>
      %141 = arith.mulf %132, %67 : vector<1x8xf32>
      %142 = arith.addf %21, %141 : vector<1x8xf32>
      %143 = arith.mulf %132, %68 : vector<1x8xf32>
      %144 = arith.addf %22, %143 : vector<1x8xf32>
      %145 = arith.addf %134, %140 : vector<1x8xf32>
      %cst_28 = arith.constant 5.000000e-01 : f32
      %146 = vector.broadcast %cst_28 : f32 to vector<1x8xf32>
      %147 = arith.mulf %146, %145 : vector<1x8xf32>
      %148 = arith.addf %136, %142 : vector<1x8xf32>
      %cst_29 = arith.constant 5.000000e-01 : f32
      %149 = vector.broadcast %cst_29 : f32 to vector<1x8xf32>
      %150 = arith.mulf %149, %148 : vector<1x8xf32>
      %151 = arith.addf %138, %144 : vector<1x8xf32>
      %cst_30 = arith.constant 5.000000e-01 : f32
      %152 = vector.broadcast %cst_30 : f32 to vector<1x8xf32>
      %153 = arith.mulf %152, %151 : vector<1x8xf32>
      %154 = arith.subf %134, %140 : vector<1x8xf32>
      %155 = arith.subf %136, %142 : vector<1x8xf32>
      %156 = arith.subf %138, %144 : vector<1x8xf32>
      %157 = arith.mulf %154, %154 : vector<1x8xf32>
      %158 = arith.mulf %155, %155 : vector<1x8xf32>
      %159 = arith.addf %157, %158 : vector<1x8xf32>
      %160 = arith.mulf %156, %156 : vector<1x8xf32>
      %161 = arith.addf %159, %160 : vector<1x8xf32>
      %162 = math.sqrt %161 : vector<1x8xf32>
      %163 = tpu.concatenate %45, %46, %47, %66, %67, %68, %134, %136, %138, %140, %142, %144, %147, %150, %153, %162 in 0 : vector<1x8xf32>, vector<1x8xf32>, vector<1x8xf32>, vector<1x8xf32>, vector<1x8xf32>, vector<1x8xf32>, vector<1x8xf32>, vector<1x8xf32>, vector<1x8xf32>, vector<1x8xf32>, vector<1x8xf32>, vector<1x8xf32>, vector<1x8xf32>, vector<1x8xf32>, vector<1x8xf32>, vector<1x8xf32> -> vector<16x8xf32>
      %c0_31 = arith.constant 0 : index
      %c0_32 = arith.constant 0 : index
      %164 = vector.load %arg5[%c0_31, %c0_32] : memref<32x8xf32, #tpu.memory_space<vmem>>, vector<16x8xf32>
      tpu.vector_store %arg5[%c0_31, %c0_32], %16 {strides = array<i32>} : memref<32x8xf32, #tpu.memory_space<vmem>>, vector<16x8xf32>,
      %c16 = arith.constant 16 : index
      %c0_33 = arith.constant 0 : index
      %165 = vector.load %arg5[%c16, %c0_33] : memref<32x8xf32, #tpu.memory_space<vmem>>, vector<16x8xf32>
      tpu.vector_store %arg5[%c16, %c0_33], %163 {strides = array<i32>} : memref<32x8xf32, #tpu.memory_space<vmem>>, vector<16x8xf32>,
    } else {
    }
    return
  }
  func.func @transform_0(%arg0: i32, %arg1: i32) -> (i32, i32) {
    %c0_i32 = arith.constant 0 : i32
    return %arg0, %arg1 : i32, i32
  }
  func.func @transform_1(%arg0: i32, %arg1: i32) -> (i32, i32) {
    %c0_i32 = arith.constant 0 : i32
    %c0_i32_0 = arith.constant 0 : i32
    return %c0_i32, %arg1 : i32, i32
  }
  func.func @transform_2(%arg0: i32, %arg1: i32) -> (i32, i32) {
    %c0_i32 = arith.constant 0 : i32
    %c0_i32_0 = arith.constant 0 : i32
    %c0_i32_1 = arith.constant 0 : i32
    return %c0_i32, %c0_i32_0 : i32, i32
  }
  func.func @transform_3(%arg0: i32, %arg1: i32) -> (i32, i32) {
    %c0_i32 = arith.constant 0 : i32
    %c0_i32_0 = arith.constant 0 : i32
    return %c0_i32, %arg0 : i32, i32
  }
}

</mosaic_0001>

<llo_original>
// kernel: tpu_custom_call.1
$region0: #{tpu_custom_call.1}
  #allocation0 [shape = 'u32[]', space=smem, size = 0x4, offset = 0x4, fixed_abs, tag = 'smem constant byte address 0x4 - core index']
  #allocation1 [shape = 'u32[72,128]{1,0:T(1,128)}', space=vmem, size = 0x9000, scoped, tag = 'internal scratch']
  #allocation2 [shape = 'f32[16,8]{1,0:T(8,128)}', space=vmem, size = 0x2000, scoped, tag = 'scratch operand']
  %s0 = inlined_call_operand.vmem [shape: f32[2,1024], index: 0, kind: input, shape index: {}]
  %s1 = inlined_call_operand.hbm [shape: bf16[16,1024], index: 1, kind: input, shape index: {}]
  %s2 = inlined_call_operand.vmem [shape: f32[16,1], index: 2, kind: input, shape index: {}]
  %s3 = inlined_call_operand.vmem [shape: f32[32,8], index: 3, kind: output, shape index: {}]
  %s4 = sld [smem:[#allocation0]]
  $region34: #{tpu_custom_call.1} parent=0
    _
  %s6 = ssub.s32 1, %s4
  %s7 = scalar_select 0, %s6, %s4
  $region1: #{tpu_custom_call.1} parent=0
    #allocation3 [shape = 'u8[32768]{0}', space=vmem, size = 0x8000, scoped, tag = 'input window, operand 1, single buffered']
    #allocation4 [shape = 's32[1]{0}', space=sflag, size = 0x4, scoped, tag = 'scoped memory for tpu_custom_call.1']
    %8 = vsyncpa [#allocation4], 0
    // Predicated region
    $region2: #{tpu_custom_call.1} parent=1 // pred_check
      _
    $region3: #{tpu_custom_call.1} parent=1 // pred_check_branch
      %10 = sbr.rel (0) target = $region5
    $region4: #{tpu_custom_call.1} parent=1 // pred_region
      _
    $region5: #{tpu_custom_call.1} parent=1 // pred_fallthru
      _
    // Predicated region
    $region6: #{tpu_custom_call.1} parent=1 // pred_check
      _
    $region7: #{tpu_custom_call.1} parent=1 // pred_check_branch
      %12 = sbr.rel (0) target = $region9
    $region8: #{tpu_custom_call.1} parent=1 // pred_region
      %14 = vsyncadd [#allocation4], 0
      %s15 = sshll.u32 %s1, 4
      %s16 = int_to_ptr.hbm [resolvable:$true] %s15
      %s17 = sshll.u32 [#allocation3], 4
      %s18 = int_to_ptr.vmem [resolvable:$true] %s17
      %23 = dma.hbm_to_vmem [thread:$0]  %s16, 1024, %s18, [#allocation4], 512, 512, 32
    $region9: #{tpu_custom_call.1} parent=1 // pred_fallthru
      _
    // Predicated region
    $region10: #{tpu_custom_call.1} parent=1 // pred_check
      _
    $region11: #{tpu_custom_call.1} parent=1 // pred_check_branch
      %25 = sbr.rel (0) target = $region13
    $region12: #{tpu_custom_call.1} parent=1 // pred_region
      _
    $region13: #{tpu_custom_call.1} parent=1 // pred_fallthru
      _
    // Predicated region
    $region14: #{tpu_custom_call.1} parent=1 // pred_check
      _
    $region15: #{tpu_custom_call.1} parent=1 // pred_check_branch
      %27 = sbr.rel (0) target = $region17
    $region16: #{tpu_custom_call.1} parent=1 // pred_region
      %29 = dma.done [#allocation4], 1024
    $region17: #{tpu_custom_call.1} parent=1 // pred_fallthru
      _
    %p31 = scmp.eq.s32.totalorder 0, 0
    // Predicated region
    $region18: #{tpu_custom_call.1} parent=1 // pred_check
      %p32 = pneg %p31
    $region19: #{tpu_custom_call.1} parent=1 // pred_check_branch
      %34 = sbr.rel (%p32) target = $region21
    $region20: #{tpu_custom_call.1} parent=1 // pred_region
      %vm35 = vcmask 64512
      %36 = vst.msk [vmem:[#allocation2] sm:$0xff] %vm35, 0.0
      %37 = vst.msk [vmem:[#allocation2 + $0x8] sm:$0xff] %vm35, 0.0
    $region21: #{tpu_custom_call.1} parent=1 // pred_fallthru
      _
    %v38 = vld [vmem:[%s0] sm:$0xff]
    %v39 = vld [vmem:[%s0 + $0x8] sm:$0xff]
    %v40 = vld [vmem:[%s0 + $0x10] sm:$0xff]
    %v41 = vld [vmem:[%s0 + $0x18] sm:$0xff]
    %v42 = vld [vmem:[%s0 + $0x20] sm:$0xff]
    %v43 = vld [vmem:[%s0 + $0x28] sm:$0xff]
    %v44 = vld [vmem:[%s0 + $0x30] sm:$0xff]
    %v45 = vld [vmem:[%s0 + $0x38] sm:$0xff]
    %54 = vst [vmem:[#allocation1] ss:$4 sm:$0xff] %v38
    %s55 = scalar_lea.vmem [#allocation1], 1
    %56 = vst [vmem:[%s55] ss:$4 sm:$0xff] %v40
    %s57 = scalar_lea.vmem [#allocation1], 2
    %58 = vst [vmem:[%s57] ss:$4 sm:$0xff] %v42
    %s59 = scalar_lea.vmem [#allocation1], 3
    %60 = vst [vmem:[%s59] ss:$4 sm:$0xff] %v44
    %s61 = scalar_lea.vmem [#allocation1], 32
    %62 = vst [vmem:[%s61] ss:$4 sm:$0xff] %v39
    %s63 = scalar_lea.vmem [#allocation1], 33
    %64 = vst [vmem:[%s63] ss:$4 sm:$0xff] %v41
    %s65 = scalar_lea.vmem [#allocation1], 34
    %66 = vst [vmem:[%s65] ss:$4 sm:$0xff] %v43
    %s67 = scalar_lea.vmem [#allocation1], 35
    %68 = vst [vmem:[%s67] ss:$4 sm:$0xff] %v45
    %v69 = vld.sshfl [vmem:[#allocation1] sm:$0xff pattern:$0x73625140]
    %v70 = vld.sshfl [vmem:[#allocation1 + $0x8] sm:$0xff pattern:$0x73625140]
    %v71 = vld.sshfl [vmem:[#allocation1 + $0x10] sm:$0xff pattern:$0x73625140]
    %v72 = vld.sshfl [vmem:[#allocation1 + $0x18] sm:$0xff pattern:$0x73625140]
    %v73 = vld.sshfl [vmem:[#allocation1 + $0x20] sm:$0xff pattern:$0x73625140]
    %v74 = vld.sshfl [vmem:[#allocation1 + $0x28] sm:$0xff pattern:$0x73625140]
    %v75 = vld.sshfl [vmem:[#allocation1 + $0x30] sm:$0xff pattern:$0x73625140]
    %v76 = vld.sshfl [vmem:[#allocation1 + $0x38] sm:$0xff pattern:$0x73625140]
    %v85 = vpack.c.bf16 %v69, %v69
    %v86 = vpack.c.bf16 %v70, %v70
    %v87 = vpack.c.bf16 %v71, %v71
    %v88 = vpack.c.bf16 %v72, %v72
    %v89 = vpack.c.bf16 %v73, %v73
    %v90 = vpack.c.bf16 %v74, %v74
    %v91 = vpack.c.bf16 %v75, %v75
    %v92 = vpack.c.bf16 %v76, %v76
    %v93 = vld [vmem:[#allocation2] sm:$0xff]
    %v94 = vld [vmem:[#allocation2 + $0x8] sm:$0xff]
    %v95 = vld [vmem:[#allocation3] sm:$0xff]
    %v96 = vld [vmem:[#allocation3 + $0x8] sm:$0xff]
    %v97 = vld [vmem:[#allocation3 + $0x10] sm:$0xff]
    %v98 = vld [vmem:[#allocation3 + $0x18] sm:$0xff]
    %v99 = vld [vmem:[#allocation3 + $0x20] sm:$0xff]
    %v100 = vld [vmem:[#allocation3 + $0x28] sm:$0xff]
    %v101 = vld [vmem:[#allocation3 + $0x30] sm:$0xff]
    %v102 = vld [vmem:[#allocation3 + $0x38] sm:$0xff]
    %v111 = vunpack.c.l.b16 %v95
    %v112 = vunpack.c.h.b16 %v95
    %v113 = vunpack.c.l.b16 %v96
    %v114 = vunpack.c.h.b16 %v96
    %v115 = vunpack.c.l.b16 %v97
    %v116 = vunpack.c.h.b16 %v97
    %v117 = vunpack.c.l.b16 %v98
    %v118 = vunpack.c.h.b16 %v98
    %v119 = vunpack.c.l.b16 %v99
    %v120 = vunpack.c.h.b16 %v99
    %v121 = vunpack.c.l.b16 %v100
    %v122 = vunpack.c.h.b16 %v100
    %v123 = vunpack.c.l.b16 %v101
    %v124 = vunpack.c.h.b16 %v101
    %v125 = vunpack.c.l.b16 %v102
    %v126 = vunpack.c.h.b16 %v102
    %v127 = vpack.c.b16 %v119, %v111
    %v128 = vpack.c.b16 %v120, %v112
    %v129 = vpack.c.b16 %v121, %v113
    %v130 = vpack.c.b16 %v122, %v114
    %v131 = vpack.c.b16 %v123, %v115
    %v132 = vpack.c.b16 %v124, %v116
    %v133 = vpack.c.b16 %v125, %v117
    %v134 = vpack.c.b16 %v126, %v118
    %143 = vmatpush.bf16.xpose.msra.mxu0 0
    %144 = vmatpush.bf16.xpose.msra.mxu0 0
    %145 = vmatpush.bf16.xpose.msra.mxu0 0
    %146 = vmatpush.bf16.xpose.msra.mxu0 0
    %147 = vmatpush.bf16.xpose.msra.mxu0 0
    %148 = vmatpush.bf16.xpose.msra.mxu0 0
    %149 = vmatpush.bf16.xpose.msra.mxu0 0
    %150 = vmatpush.bf16.xpose.msra.mxu0 %v85
    %151 = vmatmul.bf16.gmra.mxu0 %v127
    %v152 = vpop.f32.mrf.mxu0
    %v153 = vadd.f32 0.0, %v152
    %v154 = vpop.f32.mrf.mxu0
    %v155 = vadd.f32 0.0, %v154
    %156 = vdwg.mxu0
    %157 = vmatpush.bf16.xpose.msra.mxu0 0
    %158 = vmatpush.bf16.xpose.msra.mxu0 0
    %159 = vmatpush.bf16.xpose.msra.mxu0 0
    %160 = vmatpush.bf16.xpose.msra.mxu0 0
    %161 = vmatpush.bf16.xpose.msra.mxu0 0
    %162 = vmatpush.bf16.xpose.msra.mxu0 0
    %163 = vmatpush.bf16.xpose.msra.mxu0 0
    %164 = vmatpush.bf16.xpose.msra.mxu0 %v86
    %165 = vmatmul.bf16.gmra.mxu0 %v128
    %v166 = vpop.f32.mrf.mxu0
    %v167 = vadd.f32 %v153, %v166
    %v168 = vpop.f32.mrf.mxu0
    %v169 = vadd.f32 %v155, %v168
    %170 = vdwg.mxu0
    %171 = vmatpush.bf16.xpose.msra.mxu0 0
    %172 = vmatpush.bf16.xpose.msra.mxu0 0
    %173 = vmatpush.bf16.xpose.msra.mxu0 0
    %174 = vmatpush.bf16.xpose.msra.mxu0 0
    %175 = vmatpush.bf16.xpose.msra.mxu0 0
    %176 = vmatpush.bf16.xpose.msra.mxu0 0
    %177 = vmatpush.bf16.xpose.msra.mxu0 0
    %178 = vmatpush.bf16.xpose.msra.mxu0 %v87
    %179 = vmatmul.bf16.gmra.mxu0 %v129
    %v180 = vpop.f32.mrf.mxu0
    %v181 = vadd.f32 %v167, %v180
    %v182 = vpop.f32.mrf.mxu0
    %v183 = vadd.f32 %v169, %v182
    %184 = vdwg.mxu0
    %185 = vmatpush.bf16.xpose.msra.mxu0 0
    %186 = vmatpush.bf16.xpose.msra.mxu0 0
    %187 = vmatpush.bf16.xpose.msra.mxu0 0
    %188 = vmatpush.bf16.xpose.msra.mxu0 0
    %189 = vmatpush.bf16.xpose.msra.mxu0 0
    %190 = vmatpush.bf16.xpose.msra.mxu0 0
    %191 = vmatpush.bf16.xpose.msra.mxu0 0
    %192 = vmatpush.bf16.xpose.msra.mxu0 %v88
    %193 = vmatmul.bf16.gmra.mxu0 %v130
    %v194 = vpop.f32.mrf.mxu0
    %v195 = vadd.f32 %v181, %v194
    %v196 = vpop.f32.mrf.mxu0
    %v197 = vadd.f32 %v183, %v196
    %198 = vdwg.mxu0
    %199 = vmatpush.bf16.xpose.msra.mxu0 0
    %200 = vmatpush.bf16.xpose.msra.mxu0 0
    %201 = vmatpush.bf16.xpose.msra.mxu0 0
    %202 = vmatpush.bf16.xpose.msra.mxu0 0
    %203 = vmatpush.bf16.xpose.msra.mxu0 0
    %204 = vmatpush.bf16.xpose.msra.mxu0 0
    %205 = vmatpush.bf16.xpose.msra.mxu0 0
    %206 = vmatpush.bf16.xpose.msra.mxu0 %v89
    %207 = vmatmul.bf16.gmra.mxu0 %v131
    %v208 = vpop.f32.mrf.mxu0
    %v209 = vadd.f32 %v195, %v208
    %v210 = vpop.f32.mrf.mxu0
    %v211 = vadd.f32 %v197, %v210
    %212 = vdwg.mxu0
    %213 = vmatpush.bf16.xpose.msra.mxu0 0
    %214 = vmatpush.bf16.xpose.msra.mxu0 0
    %215 = vmatpush.bf16.xpose.msra.mxu0 0
    %216 = vmatpush.bf16.xpose.msra.mxu0 0
    %217 = vmatpush.bf16.xpose.msra.mxu0 0
    %218 = vmatpush.bf16.xpose.msra.mxu0 0
    %219 = vmatpush.bf16.xpose.msra.mxu0 0
    %220 = vmatpush.bf16.xpose.msra.mxu0 %v90
    %221 = vmatmul.bf16.gmra.mxu0 %v132
    %v222 = vpop.f32.mrf.mxu0
    %v223 = vadd.f32 %v209, %v222
    %v224 = vpop.f32.mrf.mxu0
    %v225 = vadd.f32 %v211, %v224
    %226 = vdwg.mxu0
    %227 = vmatpush.bf16.xpose.msra.mxu0 0
    %228 = vmatpush.bf16.xpose.msra.mxu0 0
    %229 = vmatpush.bf16.xpose.msra.mxu0 0
    %230 = vmatpush.bf16.xpose.msra.mxu0 0
    %231 = vmatpush.bf16.xpose.msra.mxu0 0
    %232 = vmatpush.bf16.xpose.msra.mxu0 0
    %233 = vmatpush.bf16.xpose.msra.mxu0 0
    %234 = vmatpush.bf16.xpose.msra.mxu0 %v91
    %235 = vmatmul.bf16.gmra.mxu0 %v133
    %v236 = vpop.f32.mrf.mxu0
    %v237 = vadd.f32 %v223, %v236
    %v238 = vpop.f32.mrf.mxu0
    %v239 = vadd.f32 %v225, %v238
    %240 = vdwg.mxu0
    %241 = vmatpush.bf16.xpose.msra.mxu0 0
    %242 = vmatpush.bf16.xpose.msra.mxu0 0
    %243 = vmatpush.bf16.xpose.msra.mxu0 0
    %244 = vmatpush.bf16.xpose.msra.mxu0 0
    %245 = vmatpush.bf16.xpose.msra.mxu0 0
    %246 = vmatpush.bf16.xpose.msra.mxu0 0
    %247 = vmatpush.bf16.xpose.msra.mxu0 0
    %248 = vmatpush.bf16.xpose.msra.mxu0 %v92
    %249 = vmatmul.bf16.gmra.mxu0 %v134
    %v250 = vpop.f32.mrf.mxu0
    %v251 = vadd.f32 %v237, %v250
    %v252 = vpop.f32.mrf.mxu0
    %v253 = vadd.f32 %v239, %v252
    %254 = vdwg.mxu0
    %v255 = vadd.f32 %v93, %v251
    %v256 = vadd.f32 %v94, %v253
    %vm257 = vcmask 64512
    %258 = vst.msk [vmem:[#allocation2] sm:$0xff] %vm257, %v255
    %259 = vst.msk [vmem:[#allocation2 + $0x8] sm:$0xff] %vm257, %v256
    // Predicated region
    $region22: #{tpu_custom_call.1} parent=1 // pred_check
      %p260 = pneg %p31
    $region23: #{tpu_custom_call.1} parent=1 // pred_check_branch
      %262 = sbr.rel (%p260) target = $region25
    $region24: #{tpu_custom_call.1} parent=1 // pred_region
      %v263 = vld [vmem:[#allocation2] sm:$0xff]
      %v264 = vld [vmem:[#allocation2 + $0x8] sm:$0xff]
      %v265 = vld [vmem:[%s2] sm:$0xff]
      %v266 = vld [vmem:[%s2 + $0x8] sm:$0xff]
      %268 = vset.pattern.permute.xlu0 0
      %269 = vperm.xlu0 %268, %v265
      %v270 = vpop.permute.xlu0 %269
      %273 = vset.pattern.permute.xlu0 0
      %274 = vperm.xlu0 %273, %v266
      %v275 = vpop.permute.xlu0 %274
      %v277 = vadd.f32 %v263, %v270
      %v278 = vadd.f32 %v264, %v275
      %v279 = vmul.f32 %v277, %v277
      %v281 = vrot.slane %v279, 1
      %v283 = vadd.f32 %v279, %v281
      %v284 = vrsqrt.pop %v283
      %v285 = vmul.f32 %v284, %v283
      %v286 = vmul.f32 %v285, %v284
      %v287 = vmul.f32 0.5, %v286
      %v288 = vsub.f32 1.5, %v287
      %v289 = vmul.f32 %v284, %v288
      %v290 = vmul.f32 %v283, %v289
      %vm291 = vcmp.eq.f32.partialorder %v283, inf
      %v292 = vsel %vm291, %v283, %v290
      %vm293 = vcmp.eq.f32.partialorder %v283, 0.0
      %v294 = vand.u32 %v283, 2147483648
      %v295 = vsel %vm293, %v294, %v292
      %vm296 = vcmp.lt.f32.partialorder %v295, 1e-06
      %v297 = vsel %vm296, 1.0, %v295
      %v298 = vmul.f32 %v295, %v295
      %v299 = vrcp.pop 6.0
      %v300 = vmul.f32 6.0, %v299
      %v301 = vsub.f32 1.0, %v300
      %v302 = vmul.f32 %v299, %v301
      %v303 = vadd.f32 %v299, %v302
      %vm304 = vweird.f32 %v299
      %v305 = vsel %vm304, %v299, %v303
      %v306 = vmul.f32 %v298, %v305
      %v307 = vsub.f32 1.0, %v306
      %v308 = vand.u32 2147483647, %v295
      %vm309 = vcmp.le.f32.partialorder %v308, 0.7853982
      %vm310 = vcmp.lt.s32.totalorder %v295, 0
      %v311 = vand.u32 %v295, 2139095040
      %v312 = vshrl.u32 %v311, 23
      %v313 = vsub.s32 %v312, 127
      %v314 = vand.u32 2147483647, %v295
      %v315 = vand.u32 %v314, 8388607
      %v316 = vor.u32 %v315, 8388608
      %v317 = vsub.s32 0, %v316
      %v318 = vadd.s32 %v313, 1
      %vm319 = vcmp.gt.s32.totalorder %v318, 0
      %v320 = vsel %vm319, %v318, 0
      %v321 = vshrl.u32 %v320, 5
      %v322 = vand.u32 %v320, 31
      %v323 = vsub.s32 32, %v322
      %v324 = vshrl.u32 683565275, %v323
      %v325 = vshll.u32 683565275, %v322
      %v326 = vshrl.u32 2475754826, %v323
      %v327 = vor.u32 %v325, %v326
      %v328 = vshll.u32 2475754826, %v322
      %v329 = vshrl.u32 2131351028, %v323
      %v330 = vor.u32 %v328, %v329
      %v331 = vshll.u32 2131351028, %v322
      %v332 = vshrl.u32 2102212464, %v323
      %v333 = vor.u32 %v331, %v332
      %v334 = vshll.u32 2102212464, %v322
      %v335 = vshrl.u32 920167782, %v323
      %v336 = vor.u32 %v334, %v335
      %v337 = vshll.u32 920167782, %v322
      %v338 = vshrl.u32 1326507024, %v323
      %v339 = vor.u32 %v337, %v338
      %vm340 = vcmp.lt.s32.totalorder %v321, 1
      %vm341 = vcmp.lt.s32.totalorder %v321, 2
      %vm342 = vcmp.lt.s32.totalorder %v321, 3
      %vm343 = vcmp.lt.s32.totalorder %v321, 4
      %v344 = vsel %vm340, %v324, %v327
      %v345 = vsel %vm343, %v333, 2102212464
      %v346 = vsel %vm342, %v330, %v345
      %v347 = vsel %vm341, %v344, %v346
      %v348 = vsel %vm340, %v327, %v330
      %v349 = vsel %vm343, %v336, 920167782
      %v350 = vsel %vm342, %v333, %v349
      %v351 = vsel %vm341, %v348, %v350
      %v352 = vsel %vm340, %v330, %v333
      %v353 = vsel %vm343, %v339, 1326507024
      %v354 = vsel %vm342, %v336, %v353
      %v355 = vsel %vm341, %v352, %v354
      %v356 = vshll.u32 %v316, 8
      %v357 = vand.u32 %v356, 65535
      %v358 = vshrl.u32 %v356, 16
      %v359 = vand.u32 %v355, 65535
      %v360 = vshrl.u32 %v355, 16
      %v361 = vmul.u32 %v357, %v359
      %v362 = vmul.u32 %v357, %v360
      %v363 = vmul.u32 %v358, %v359
      %v364 = vmul.u32 %v358, %v360
      %v365 = vshll.u32 %v362, 16
      %v366 = vshrl.u32 %v362, 16
      %v367 = vshll.u32 %v363, 16
      %v368 = vshrl.u32 %v363, 16
      %vm369 = vc.u32 %v361, %v365
      %v370 = vsel %vm369, 1, 0
      %v371 = vadd.s32 %v361, %v365
      %v372 = vadd.s32 %v364, %v370
      %vm373 = vc.u32 %v371, %v367
      %v374 = vsel %vm373, 1, 0
      %v375 = vadd.s32 %v371, %v367
      %v376 = vadd.s32 %v372, %v374
      %v377 = vadd.s32 %v376, %v366
      %v378 = vadd.s32 %v377, %v368
      %v379 = vand.u32 %v356, 65535
      %v380 = vshrl.u32 %v356, 16
      %v381 = vand.u32 %v351, 65535
      %v382 = vshrl.u32 %v351, 16
      %v383 = vmul.u32 %v379, %v381
      %v384 = vmul.u32 %v379, %v382
      %v385 = vmul.u32 %v380, %v381
      %v386 = vmul.u32 %v380, %v382
      %v387 = vshll.u32 %v384, 16
      %v388 = vshrl.u32 %v384, 16
      %v389 = vshll.u32 %v385, 16
      %v390 = vshrl.u32 %v385, 16
      %vm391 = vc.u32 %v383, %v387
      %v392 = vsel %vm391, 1, 0
      %v393 = vadd.s32 %v383, %v387
      %v394 = vadd.s32 %v386, %v392
      %vm395 = vc.u32 %v393, %v389
      %v396 = vsel %vm395, 1, 0
      %v397 = vadd.s32 %v393, %v389
      %v398 = vadd.s32 %v394, %v396
      %v399 = vadd.s32 %v398, %v388
      %v400 = vadd.s32 %v399, %v390
      %v401 = vmul.u32 %v356, %v347
      %v402 = vadd.s32 %v378, %v397
      %vm403 = vc.u32 %v378, %v397
      %v404 = vadd.s32 %v400, 1
      %v405 = vsel %vm403, %v404, %v400
      %v406 = vadd.s32 %v401, %v405
      %v407 = vadd.s32 %v406, 536870912
      %v408 = vshrl.u32 %v407, 30
      %v409 = vshll.u32 %v408, 30
      %v410 = vsub.s32 %v406, %v409
      %vm411 = vcmp.lt.s32.totalorder %v410, 0
      %v412 = vsub.s32 0, %v410
      %v413 = vsel %vm411, %v412, %v410
      %v414 = vclz %v413
      %v415 = vsub.s32 %v414, 2
      %vm416 = vcmp.gt.s32.totalorder 0, %v415
      %v417 = vsel %vm416, 0, %v415
      %v418 = vsub.s32 32, %v417
      %v419 = vshll.u32 %v410, %v417
      %v420 = vshrl.u32 %v402, %v418
      %v421 = vor.u32 %v419, %v420
      %v422 = vsub.s32 4294967266, %v417
      %v423 = vadd.s32 %v422, 127
      %v424 = vshll.u32 %v423, 23
      %v425 = vor.u32 4788187, %v424
      %v426 = vand.u32 2147483647, %v425
      %v428 = vcvt.s32.f32 %v421
      %v429 = vmul.f32 %v428, %v426
      %v430 = vxor.u32 %v429, 2147483648
      %v431 = vsel %vm310, %v430, %v429
      %v432 = vsub.s32 4, %v408
      %v433 = vsel %vm310, %v432, %v408
      %v434 = vsel %vm309, %v295, %v431
      %v435 = vsel %vm309, 0, %v433
      %v436 = vmul.f32 %v434, %v434
      %v437 = vmul.f32 %v436, -0.001358992
      %v438 = vadd.f32 %v437, 0.041655596
      %v439 = vmul.f32 %v436, %v438
      %v440 = vadd.f32 %v439, -0.4999988
      %v441 = vmul.f32 %v436, %v440
      %v442 = vadd.f32 1.0, %v441
      %v443 = vmul.f32 %v434, %v434
      %v444 = vmul.f32 %v443, -0.00019511016
      %v445 = vadd.f32 %v444, 0.008332121
      %v446 = vmul.f32 %v443, %v445
      %v447 = vadd.f32 %v446, -0.16666654
      %v448 = vmul.f32 %v443, %v447
      %v449 = vadd.f32 %v448, 1.0
      %v450 = vmul.f32 %v449, %v434
      %vm451 = vweird.f32 %v295
      %v452 = vadd.s32 %v435, 3
      %v453 = vand.u32 %v452, 3
      %vm454 = vcmp.lt.s32.totalorder %v453, 2
      %vm455 = vcmp.eq.s32.totalorder %v453, 0
      %v456 = vxor.u32 %v450, 2147483648
      %v457 = vsel %vm455, %v442, %v456
      %vm458 = vcmp.eq.s32.totalorder %v453, 2
      %v459 = vxor.u32 %v442, 2147483648
      %v460 = vsel %vm458, %v459, %v450
      %v461 = vsel %vm454, %v457, %v460
      %v462 = vsel %vm451, nan, %v461
      %v463 = vrcp.pop %v297
      %v464 = vmul.f32 %v297, %v463
      %v465 = vsub.f32 1.0, %v464
      %v466 = vmul.f32 %v463, %v465
      %v467 = vadd.f32 %v463, %v466
      %vm468 = vweird.f32 %v297
      %vm469 = vweird.f32 %v463
      %vm470 = vmor %vm468, %vm469
      %v471 = vsel %vm470, %v463, %v467
      %v472 = vand.u32 2147483647, %v297
      %vm473 = vcmp.eq.f32.partialorder %v472, 8.507059e+37
      %v474 = vand.u32 %v297, 2147483648
      %v475 = vor.u32 1.1754944e-38, %v474
      %v476 = vsel %vm473, %v475, %v471
      %v477 = vmul.f32 %v462, %v476
      %v478 = vsel %vm296, %v307, %v477
      %v479 = vsub.f32 0.0, %v277
      %v481 = vrot.slane %v478, 7
      %v483 = vmul.f32 %v479, %v481
      %v484 = vmul.f32 %v277, %v478
      %v485 = vand.u32 2147483647, %v295
      %vm486 = vcmp.le.f32.partialorder %v485, 0.7853982
      %vm487 = vcmp.lt.s32.totalorder %v295, 0
      %v488 = vand.u32 %v295, 2139095040
      %v489 = vshrl.u32 %v488, 23
      %v490 = vsub.s32 %v489, 127
      %v491 = vand.u32 2147483647, %v295
      %v492 = vand.u32 %v491, 8388607
      %v493 = vor.u32 %v492, 8388608
      %v494 = vsub.s32 0, %v493
      %v495 = vadd.s32 %v490, 1
      %vm496 = vcmp.gt.s32.totalorder %v495, 0
      %v497 = vsel %vm496, %v495, 0
      %v498 = vshrl.u32 %v497, 5
      %v499 = vand.u32 %v497, 31
      %v500 = vsub.s32 32, %v499
      %v501 = vshrl.u32 683565275, %v500
      %v502 = vshll.u32 683565275, %v499
      %v503 = vshrl.u32 2475754826, %v500
      %v504 = vor.u32 %v502, %v503
      %v505 = vshll.u32 2475754826, %v499
      %v506 = vshrl.u32 2131351028, %v500
      %v507 = vor.u32 %v505, %v506
      %v508 = vshll.u32 2131351028, %v499
      %v509 = vshrl.u32 2102212464, %v500
      %v510 = vor.u32 %v508, %v509
      %v511 = vshll.u32 2102212464, %v499
      %v512 = vshrl.u32 920167782, %v500
      %v513 = vor.u32 %v511, %v512
      %v514 = vshll.u32 920167782, %v499
      %v515 = vshrl.u32 1326507024, %v500
      %v516 = vor.u32 %v514, %v515
      %vm517 = vcmp.lt.s32.totalorder %v498, 1
      %vm518 = vcmp.lt.s32.totalorder %v498, 2
      %vm519 = vcmp.lt.s32.totalorder %v498, 3
      %vm520 = vcmp.lt.s32.totalorder %v498, 4
      %v521 = vsel %vm517, %v501, %v504
      %v522 = vsel %vm520, %v510, 2102212464
      %v523 = vsel %vm519, %v507, %v522
      %v524 = vsel %vm518, %v521, %v523
      %v525 = vsel %vm517, %v504, %v507
      %v526 = vsel %vm520, %v513, 920167782
      %v527 = vsel %vm519, %v510, %v526
      %v528 = vsel %vm518, %v525, %v527
      %v529 = vsel %vm517, %v507, %v510
      %v530 = vsel %vm520, %v516, 1326507024
      %v531 = vsel %vm519, %v513, %v530
      %v532 = vsel %vm518, %v529, %v531
      %v533 = vshll.u32 %v493, 8
      %v534 = vand.u32 %v533, 65535
      %v535 = vshrl.u32 %v533, 16
      %v536 = vand.u32 %v532, 65535
      %v537 = vshrl.u32 %v532, 16
      %v538 = vmul.u32 %v534, %v536
      %v539 = vmul.u32 %v534, %v537
      %v540 = vmul.u32 %v535, %v536
      %v541 = vmul.u32 %v535, %v537
      %v542 = vshll.u32 %v539, 16
      %v543 = vshrl.u32 %v539, 16
      %v544 = vshll.u32 %v540, 16
      %v545 = vshrl.u32 %v540, 16
      %vm546 = vc.u32 %v538, %v542
      %v547 = vsel %vm546, 1, 0
      %v548 = vadd.s32 %v538, %v542
      %v549 = vadd.s32 %v541, %v547
      %vm550 = vc.u32 %v548, %v544
      %v551 = vsel %vm550, 1, 0
      %v552 = vadd.s32 %v548, %v544
      %v553 = vadd.s32 %v549, %v551
      %v554 = vadd.s32 %v553, %v543
      %v555 = vadd.s32 %v554, %v545
      %v556 = vand.u32 %v533, 65535
      %v557 = vshrl.u32 %v533, 16
      %v558 = vand.u32 %v528, 65535
      %v559 = vshrl.u32 %v528, 16
      %v560 = vmul.u32 %v556, %v558
      %v561 = vmul.u32 %v556, %v559
      %v562 = vmul.u32 %v557, %v558
      %v563 = vmul.u32 %v557, %v559
      %v564 = vshll.u32 %v561, 16
      %v565 = vshrl.u32 %v561, 16
      %v566 = vshll.u32 %v562, 16
      %v567 = vshrl.u32 %v562, 16
      %vm568 = vc.u32 %v560, %v564
      %v569 = vsel %vm568, 1, 0
      %v570 = vadd.s32 %v560, %v564
      %v571 = vadd.s32 %v563, %v569
      %vm572 = vc.u32 %v570, %v566
      %v573 = vsel %vm572, 1, 0
      %v574 = vadd.s32 %v570, %v566
      %v575 = vadd.s32 %v571, %v573
      %v576 = vadd.s32 %v575, %v565
      %v577 = vadd.s32 %v576, %v567
      %v578 = vmul.u32 %v533, %v524
      %v579 = vadd.s32 %v555, %v574
      %vm580 = vc.u32 %v555, %v574
      %v581 = vadd.s32 %v577, 1
      %v582 = vsel %vm580, %v581, %v577
      %v583 = vadd.s32 %v578, %v582
      %v584 = vadd.s32 %v583, 536870912
      %v585 = vshrl.u32 %v584, 30
      %v586 = vshll.u32 %v585, 30
      %v587 = vsub.s32 %v583, %v586
      %vm588 = vcmp.lt.s32.totalorder %v587, 0
      %v589 = vsub.s32 0, %v587
      %v590 = vsel %vm588, %v589, %v587
      %v591 = vclz %v590
      %v592 = vsub.s32 %v591, 2
      %vm593 = vcmp.gt.s32.totalorder 0, %v592
      %v594 = vsel %vm593, 0, %v592
      %v595 = vsub.s32 32, %v594
      %v596 = vshll.u32 %v587, %v594
      %v597 = vshrl.u32 %v579, %v595
      %v598 = vor.u32 %v596, %v597
      %v599 = vsub.s32 4294967266, %v594
      %v600 = vadd.s32 %v599, 127
      %v601 = vshll.u32 %v600, 23
      %v602 = vor.u32 4788187, %v601
      %v603 = vand.u32 2147483647, %v602
      %v605 = vcvt.s32.f32 %v598
      %v606 = vmul.f32 %v605, %v603
      %v607 = vxor.u32 %v606, 2147483648
      %v608 = vsel %vm487, %v607, %v606
      %v609 = vsub.s32 4, %v585
      %v610 = vsel %vm487, %v609, %v585
      %v611 = vsel %vm486, %v295, %v608
      %v612 = vsel %vm486, 0, %v610
      %v613 = vmul.f32 %v611, %v611
      %v614 = vmul.f32 %v613, -0.001358992
      %v615 = vadd.f32 %v614, 0.041655596
      %v616 = vmul.f32 %v613, %v615
      %v617 = vadd.f32 %v616, -0.4999988
      %v618 = vmul.f32 %v613, %v617
      %v619 = vadd.f32 1.0, %v618
      %v620 = vmul.f32 %v611, %v611
      %v621 = vmul.f32 %v620, -0.00019511016
      %v622 = vadd.f32 %v621, 0.008332121
      %v623 = vmul.f32 %v620, %v622
      %v624 = vadd.f32 %v623, -0.16666654
      %v625 = vmul.f32 %v620, %v624
      %v626 = vadd.f32 %v625, 1.0
      %v627 = vmul.f32 %v626, %v611
      %vm628 = vweird.f32 %v295
      %v629 = vand.u32 %v612, 3
      %vm630 = vcmp.lt.s32.totalorder %v629, 2
      %vm631 = vcmp.eq.s32.totalorder %v629, 0
      %v632 = vxor.u32 %v627, 2147483648
      %v633 = vsel %vm631, %v619, %v632
      %vm634 = vcmp.eq.s32.totalorder %v629, 2
      %v635 = vxor.u32 %v619, 2147483648
      %v636 = vsel %vm634, %v635, %v627
      %v637 = vsel %vm630, %v633, %v636
      %v638 = vsel %vm628, nan, %v637
      %v639 = vmul.f32 %v278, %v278
      %v641 = vrot.slane %v639, 1
      %v643 = vadd.f32 %v639, %v641
      %v644 = vrsqrt.pop %v643
      %v645 = vmul.f32 %v644, %v643
      %v646 = vmul.f32 %v645, %v644
      %v647 = vmul.f32 0.5, %v646
      %v648 = vsub.f32 1.5, %v647
      %v649 = vmul.f32 %v644, %v648
      %v650 = vmul.f32 %v643, %v649
      %vm651 = vcmp.eq.f32.partialorder %v643, inf
      %v652 = vsel %vm651, %v643, %v650
      %vm653 = vcmp.eq.f32.partialorder %v643, 0.0
      %v654 = vand.u32 %v643, 2147483648
      %v655 = vsel %vm653, %v654, %v652
      %vm656 = vcmp.lt.f32.partialorder %v655, 1e-06
      %v657 = vsel %vm656, 1.0, %v655
      %v658 = vmul.f32 %v655, %v655
      %v659 = vmul.f32 %v658, %v305
      %v660 = vsub.f32 1.0, %v659
      %v661 = vand.u32 2147483647, %v655
      %vm662 = vcmp.le.f32.partialorder %v661, 0.7853982
      %vm663 = vcmp.lt.s32.totalorder %v655, 0
      %v664 = vand.u32 %v655, 2139095040
      %v665 = vshrl.u32 %v664, 23
      %v666 = vsub.s32 %v665, 127
      %v667 = vand.u32 2147483647, %v655
      %v668 = vand.u32 %v667, 8388607
      %v669 = vor.u32 %v668, 8388608
      %v670 = vsub.s32 0, %v669
      %v671 = vadd.s32 %v666, 1
      %vm672 = vcmp.gt.s32.totalorder %v671, 0
      %v673 = vsel %vm672, %v671, 0
      %v674 = vshrl.u32 %v673, 5
      %v675 = vand.u32 %v673, 31
      %v676 = vsub.s32 32, %v675
      %v677 = vshrl.u32 683565275, %v676
      %v678 = vshll.u32 683565275, %v675
      %v679 = vshrl.u32 2475754826, %v676
      %v680 = vor.u32 %v678, %v679
      %v681 = vshll.u32 2475754826, %v675
      %v682 = vshrl.u32 2131351028, %v676
      %v683 = vor.u32 %v681, %v682
      %v684 = vshll.u32 2131351028, %v675
      %v685 = vshrl.u32 2102212464, %v676
      %v686 = vor.u32 %v684, %v685
      %v687 = vshll.u32 2102212464, %v675
      %v688 = vshrl.u32 920167782, %v676
      %v689 = vor.u32 %v687, %v688
      %v690 = vshll.u32 920167782, %v675
      %v691 = vshrl.u32 1326507024, %v676
      %v692 = vor.u32 %v690, %v691
      %vm693 = vcmp.lt.s32.totalorder %v674, 1
      %vm694 = vcmp.lt.s32.totalorder %v674, 2
      %vm695 = vcmp.lt.s32.totalorder %v674, 3
      %vm696 = vcmp.lt.s32.totalorder %v674, 4
      %v697 = vsel %vm693, %v677, %v680
      %v698 = vsel %vm696, %v686, 2102212464
      %v699 = vsel %vm695, %v683, %v698
      %v700 = vsel %vm694, %v697, %v699
      %v701 = vsel %vm693, %v680, %v683
      %v702 = vsel %vm696, %v689, 920167782
      %v703 = vsel %vm695, %v686, %v702
      %v704 = vsel %vm694, %v701, %v703
      %v705 = vsel %vm693, %v683, %v686
      %v706 = vsel %vm696, %v692, 1326507024
      %v707 = vsel %vm695, %v689, %v706
      %v708 = vsel %vm694, %v705, %v707
      %v709 = vshll.u32 %v669, 8
      %v710 = vand.u32 %v709, 65535
      %v711 = vshrl.u32 %v709, 16
      %v712 = vand.u32 %v708, 65535
      %v713 = vshrl.u32 %v708, 16
      %v714 = vmul.u32 %v710, %v712
      %v715 = vmul.u32 %v710, %v713
      %v716 = vmul.u32 %v711, %v712
      %v717 = vmul.u32 %v711, %v713
      %v718 = vshll.u32 %v715, 16
      %v719 = vshrl.u32 %v715, 16
      %v720 = vshll.u32 %v716, 16
      %v721 = vshrl.u32 %v716, 16
      %vm722 = vc.u32 %v714, %v718
      %v723 = vsel %vm722, 1, 0
      %v724 = vadd.s32 %v714, %v718
      %v725 = vadd.s32 %v717, %v723
      %vm726 = vc.u32 %v724, %v720
      %v727 = vsel %vm726, 1, 0
      %v728 = vadd.s32 %v724, %v720
      %v729 = vadd.s32 %v725, %v727
      %v730 = vadd.s32 %v729, %v719
      %v731 = vadd.s32 %v730, %v721
      %v732 = vand.u32 %v709, 65535
      %v733 = vshrl.u32 %v709, 16
      %v734 = vand.u32 %v704, 65535
      %v735 = vshrl.u32 %v704, 16
      %v736 = vmul.u32 %v732, %v734
      %v737 = vmul.u32 %v732, %v735
      %v738 = vmul.u32 %v733, %v734
      %v739 = vmul.u32 %v733, %v735
      %v740 = vshll.u32 %v737, 16
      %v741 = vshrl.u32 %v737, 16
      %v742 = vshll.u32 %v738, 16
      %v743 = vshrl.u32 %v738, 16
      %vm744 = vc.u32 %v736, %v740
      %v745 = vsel %vm744, 1, 0
      %v746 = vadd.s32 %v736, %v740
      %v747 = vadd.s32 %v739, %v745
      %vm748 = vc.u32 %v746, %v742
      %v749 = vsel %vm748, 1, 0
      %v750 = vadd.s32 %v746, %v742
      %v751 = vadd.s32 %v747, %v749
      %v752 = vadd.s32 %v751, %v741
      %v753 = vadd.s32 %v752, %v743
      %v754 = vmul.u32 %v709, %v700
      %v755 = vadd.s32 %v731, %v750
      %vm756 = vc.u32 %v731, %v750
      %v757 = vadd.s32 %v753, 1
      %v758 = vsel %vm756, %v757, %v753
      %v759 = vadd.s32 %v754, %v758
      %v760 = vadd.s32 %v759, 536870912
      %v761 = vshrl.u32 %v760, 30
      %v762 = vshll.u32 %v761, 30
      %v763 = vsub.s32 %v759, %v762
      %vm764 = vcmp.lt.s32.totalorder %v763, 0
      %v765 = vsub.s32 0, %v763
      %v766 = vsel %vm764, %v765, %v763
      %v767 = vclz %v766
      %v768 = vsub.s32 %v767, 2
      %vm769 = vcmp.gt.s32.totalorder 0, %v768
      %v770 = vsel %vm769, 0, %v768
      %v771 = vsub.s32 32, %v770
      %v772 = vshll.u32 %v763, %v770
      %v773 = vshrl.u32 %v755, %v771
      %v774 = vor.u32 %v772, %v773
      %v775 = vsub.s32 4294967266, %v770
      %v776 = vadd.s32 %v775, 127
      %v777 = vshll.u32 %v776, 23
      %v778 = vor.u32 4788187, %v777
      %v779 = vand.u32 2147483647, %v778
      %v781 = vcvt.s32.f32 %v774
      %v782 = vmul.f32 %v781, %v779
      %v783 = vxor.u32 %v782, 2147483648
      %v784 = vsel %vm663, %v783, %v782
      %v785 = vsub.s32 4, %v761
      %v786 = vsel %vm663, %v785, %v761
      %v787 = vsel %vm662, %v655, %v784
      %v788 = vsel %vm662, 0, %v786
      %v789 = vmul.f32 %v787, %v787
      %v790 = vmul.f32 %v789, -0.001358992
      %v791 = vadd.f32 %v790, 0.041655596
      %v792 = vmul.f32 %v789, %v791
      %v793 = vadd.f32 %v792, -0.4999988
      %v794 = vmul.f32 %v789, %v793
      %v795 = vadd.f32 1.0, %v794
      %v796 = vmul.f32 %v787, %v787
      %v797 = vmul.f32 %v796, -0.00019511016
      %v798 = vadd.f32 %v797, 0.008332121
      %v799 = vmul.f32 %v796, %v798
      %v800 = vadd.f32 %v799, -0.16666654
      %v801 = vmul.f32 %v796, %v800
      %v802 = vadd.f32 %v801, 1.0
      %v803 = vmul.f32 %v802, %v787
      %vm804 = vweird.f32 %v655
      %v805 = vadd.s32 %v788, 3
      %v806 = vand.u32 %v805, 3
      %vm807 = vcmp.lt.s32.totalorder %v806, 2
      %vm808 = vcmp.eq.s32.totalorder %v806, 0
      %v809 = vxor.u32 %v803, 2147483648
      %v810 = vsel %vm808, %v795, %v809
      %vm811 = vcmp.eq.s32.totalorder %v806, 2
      %v812 = vxor.u32 %v795, 2147483648
      %v813 = vsel %vm811, %v812, %v803
      %v814 = vsel %vm807, %v810, %v813
      %v815 = vsel %vm804, nan, %v814
      %v816 = vrcp.pop %v657
      %v817 = vmul.f32 %v657, %v816
      %v818 = vsub.f32 1.0, %v817
      %v819 = vmul.f32 %v816, %v818
      %v820 = vadd.f32 %v816, %v819
      %vm821 = vweird.f32 %v657
      %vm822 = vweird.f32 %v816
      %vm823 = vmor %vm821, %vm822
      %v824 = vsel %vm823, %v816, %v820
      %v825 = vand.u32 2147483647, %v657
      %vm826 = vcmp.eq.f32.partialorder %v825, 8.507059e+37
      %v827 = vand.u32 %v657, 2147483648
      %v828 = vor.u32 1.1754944e-38, %v827
      %v829 = vsel %vm826, %v828, %v824
      %v830 = vmul.f32 %v815, %v829
      %v831 = vsel %vm656, %v660, %v830
      %v832 = vsub.f32 0.0, %v278
      %v834 = vrot.slane %v831, 7
      %v836 = vmul.f32 %v832, %v834
      %v837 = vmul.f32 %v278, %v831
      %v838 = vand.u32 2147483647, %v655
      %vm839 = vcmp.le.f32.partialorder %v838, 0.7853982
      %vm840 = vcmp.lt.s32.totalorder %v655, 0
      %v841 = vand.u32 %v655, 2139095040
      %v842 = vshrl.u32 %v841, 23
      %v843 = vsub.s32 %v842, 127
      %v844 = vand.u32 2147483647, %v655
      %v845 = vand.u32 %v844, 8388607
      %v846 = vor.u32 %v845, 8388608
      %v847 = vsub.s32 0, %v846
      %v848 = vadd.s32 %v843, 1
      %vm849 = vcmp.gt.s32.totalorder %v848, 0
      %v850 = vsel %vm849, %v848, 0
      %v851 = vshrl.u32 %v850, 5
      %v852 = vand.u32 %v850, 31
      %v853 = vsub.s32 32, %v852
      %v854 = vshrl.u32 683565275, %v853
      %v855 = vshll.u32 683565275, %v852
      %v856 = vshrl.u32 2475754826, %v853
      %v857 = vor.u32 %v855, %v856
      %v858 = vshll.u32 2475754826, %v852
      %v859 = vshrl.u32 2131351028, %v853
      %v860 = vor.u32 %v858, %v859
      %v861 = vshll.u32 2131351028, %v852
      %v862 = vshrl.u32 2102212464, %v853
      %v863 = vor.u32 %v861, %v862
      %v864 = vshll.u32 2102212464, %v852
      %v865 = vshrl.u32 920167782, %v853
      %v866 = vor.u32 %v864, %v865
      %v867 = vshll.u32 920167782, %v852
      %v868 = vshrl.u32 1326507024, %v853
      %v869 = vor.u32 %v867, %v868
      %vm870 = vcmp.lt.s32.totalorder %v851, 1
      %vm871 = vcmp.lt.s32.totalorder %v851, 2
      %vm872 = vcmp.lt.s32.totalorder %v851, 3
      %vm873 = vcmp.lt.s32.totalorder %v851, 4
      %v874 = vsel %vm870, %v854, %v857
      %v875 = vsel %vm873, %v863, 2102212464
      %v876 = vsel %vm872, %v860, %v875
      %v877 = vsel %vm871, %v874, %v876
      %v878 = vsel %vm870, %v857, %v860
      %v879 = vsel %vm873, %v866, 920167782
      %v880 = vsel %vm872, %v863, %v879
      %v881 = vsel %vm871, %v878, %v880
      %v882 = vsel %vm870, %v860, %v863
      %v883 = vsel %vm873, %v869, 1326507024
      %v884 = vsel %vm872, %v866, %v883
      %v885 = vsel %vm871, %v882, %v884
      %v886 = vshll.u32 %v846, 8
      %v887 = vand.u32 %v886, 65535
      %v888 = vshrl.u32 %v886, 16
      %v889 = vand.u32 %v885, 65535
      %v890 = vshrl.u32 %v885, 16
      %v891 = vmul.u32 %v887, %v889
      %v892 = vmul.u32 %v887, %v890
      %v893 = vmul.u32 %v888, %v889
      %v894 = vmul.u32 %v888, %v890
      %v895 = vshll.u32 %v892, 16
      %v896 = vshrl.u32 %v892, 16
      %v897 = vshll.u32 %v893, 16
      %v898 = vshrl.u32 %v893, 16
      %vm899 = vc.u32 %v891, %v895
      %v900 = vsel %vm899, 1, 0
      %v901 = vadd.s32 %v891, %v895
      %v902 = vadd.s32 %v894, %v900
      %vm903 = vc.u32 %v901, %v897
      %v904 = vsel %vm903, 1, 0
      %v905 = vadd.s32 %v901, %v897
      %v906 = vadd.s32 %v902, %v904
      %v907 = vadd.s32 %v906, %v896
      %v908 = vadd.s32 %v907, %v898
      %v909 = vand.u32 %v886, 65535
      %v910 = vshrl.u32 %v886, 16
      %v911 = vand.u32 %v881, 65535
      %v912 = vshrl.u32 %v881, 16
      %v913 = vmul.u32 %v909, %v911
      %v914 = vmul.u32 %v909, %v912
      %v915 = vmul.u32 %v910, %v911
      %v916 = vmul.u32 %v910, %v912
      %v917 = vshll.u32 %v914, 16
      %v918 = vshrl.u32 %v914, 16
      %v919 = vshll.u32 %v915, 16
      %v920 = vshrl.u32 %v915, 16
      %vm921 = vc.u32 %v913, %v917
      %v922 = vsel %vm921, 1, 0
      %v923 = vadd.s32 %v913, %v917
      %v924 = vadd.s32 %v916, %v922
      %vm925 = vc.u32 %v923, %v919
      %v926 = vsel %vm925, 1, 0
      %v927 = vadd.s32 %v923, %v919
      %v928 = vadd.s32 %v924, %v926
      %v929 = vadd.s32 %v928, %v918
      %v930 = vadd.s32 %v929, %v920
      %v931 = vmul.u32 %v886, %v877
      %v932 = vadd.s32 %v908, %v927
      %vm933 = vc.u32 %v908, %v927
      %v934 = vadd.s32 %v930, 1
      %v935 = vsel %vm933, %v934, %v930
      %v936 = vadd.s32 %v931, %v935
      %v937 = vadd.s32 %v936, 536870912
      %v938 = vshrl.u32 %v937, 30
      %v939 = vshll.u32 %v938, 30
      %v940 = vsub.s32 %v936, %v939
      %vm941 = vcmp.lt.s32.totalorder %v940, 0
      %v942 = vsub.s32 0, %v940
      %v943 = vsel %vm941, %v942, %v940
      %v944 = vclz %v943
      %v945 = vsub.s32 %v944, 2
      %vm946 = vcmp.gt.s32.totalorder 0, %v945
      %v947 = vsel %vm946, 0, %v945
      %v948 = vsub.s32 32, %v947
      %v949 = vshll.u32 %v940, %v947
      %v950 = vshrl.u32 %v932, %v948
      %v951 = vor.u32 %v949, %v950
      %v952 = vsub.s32 4294967266, %v947
      %v953 = vadd.s32 %v952, 127
      %v954 = vshll.u32 %v953, 23
      %v955 = vor.u32 4788187, %v954
      %v956 = vand.u32 2147483647, %v955
      %v958 = vcvt.s32.f32 %v951
      %v959 = vmul.f32 %v958, %v956
      %v960 = vxor.u32 %v959, 2147483648
      %v961 = vsel %vm840, %v960, %v959
      %v962 = vsub.s32 4, %v938
      %v963 = vsel %vm840, %v962, %v938
      %v964 = vsel %vm839, %v655, %v961
      %v965 = vsel %vm839, 0, %v963
      %v966 = vmul.f32 %v964, %v964
      %v967 = vmul.f32 %v966, -0.001358992
      %v968 = vadd.f32 %v967, 0.041655596
      %v969 = vmul.f32 %v966, %v968
      %v970 = vadd.f32 %v969, -0.4999988
      %v971 = vmul.f32 %v966, %v970
      %v972 = vadd.f32 1.0, %v971
      %v973 = vmul.f32 %v964, %v964
      %v974 = vmul.f32 %v973, -0.00019511016
      %v975 = vadd.f32 %v974, 0.008332121
      %v976 = vmul.f32 %v973, %v975
      %v977 = vadd.f32 %v976, -0.16666654
      %v978 = vmul.f32 %v973, %v977
      %v979 = vadd.f32 %v978, 1.0
      %v980 = vmul.f32 %v979, %v964
      %vm981 = vweird.f32 %v655
      %v982 = vand.u32 %v965, 3
      %vm983 = vcmp.lt.s32.totalorder %v982, 2
      %vm984 = vcmp.eq.s32.totalorder %v982, 0
      %v985 = vxor.u32 %v980, 2147483648
      %v986 = vsel %vm984, %v972, %v985
      %vm987 = vcmp.eq.s32.totalorder %v982, 2
      %v988 = vxor.u32 %v972, 2147483648
      %v989 = vsel %vm987, %v988, %v980
      %v990 = vsel %vm983, %v986, %v989
      %v991 = vsel %vm981, nan, %v990
      %v993 = vrot.slane %v638, 6
      %v995 = vmul.f32 %v837, %v993
      %v997 = vrot.slane %v484, 6
      %v999 = vmul.f32 %v991, %v997
      %v1000 = vsub.f32 %v995, %v999
      %v1002 = vrot.slane %v483, 7
      %v1004 = vmul.f32 %v991, %v1002
      %v1005 = vrot.slane %v638, 5
      %v1007 = vmul.f32 %v836, %v1005
      %v1009 = vrot.slane %v1007, 1
      %v1011 = vsub.f32 %v1004, %v1009
      %v1012 = vrot.slane %v484, 5
      %v1014 = vmul.f32 %v836, %v1012
      %v1015 = vmul.f32 %v837, %v1002
      %v1017 = vrot.slane %v1015, 7
      %v1019 = vsub.f32 %v1014, %v1017
      %v1020 = vsub.f32 0.0, %v836
      %v1021 = vsub.f32 0.0, %v837
      %v1022 = vsub.f32 0.0, %v991
      %v1024 = vrot.slane %v277, 5
      %v1026 = vsub.f32 %v277, %v1024
      %v1028 = vrot.slane %v1019, 1
      %v1030 = vmul.f32 %v1021, %v1028
      %v1031 = vmul.f32 %v1022, %v1011
      %v1032 = vsub.f32 %v1030, %v1031
      %v1034 = vrot.slane %v1032, 1
      %v1036 = vmul.f32 %v483, %v1034
      %v1037 = vmul.f32 %v1022, %v1000
      %v1038 = vmul.f32 %v1020, %v1019
      %v1040 = vrot.slane %v1038, 1
      %v1042 = vsub.f32 %v1037, %v1040
      %v1044 = vrot.slane %v1042, 2
      %v1046 = vmul.f32 %v484, %v1044
      %v1048 = vrot.slane %v1046, 7
      %v1050 = vadd.f32 %v1036, %v1048
      %v1052 = vrot.slane %v1011, 7
      %v1054 = vmul.f32 %v1020, %v1052
      %v1055 = vmul.f32 %v1021, %v1000
      %v1057 = vrot.slane %v1055, 7
      %v1059 = vsub.f32 %v1054, %v1057
      %v1061 = vrot.slane %v1059, 3
      %v1063 = vmul.f32 %v638, %v1061
      %v1065 = vrot.slane %v1063, 7
      %v1067 = vadd.f32 %v1050, %v1065
      %v1068 = vrcp.pop %v1067
      %v1069 = vmul.f32 %v1067, %v1068
      %v1070 = vsub.f32 1.0, %v1069
      %v1071 = vmul.f32 %v1068, %v1070
      %v1072 = vadd.f32 %v1068, %v1071
      %vm1073 = vweird.f32 %v1067
      %vm1074 = vweird.f32 %v1068
      %vm1075 = vmor %vm1073, %vm1074
      %v1076 = vsel %vm1075, %v1068, %v1072
      %v1077 = vand.u32 2147483647, %v1067
      %vm1078 = vcmp.eq.f32.partialorder %v1077, 8.507059e+37
      %v1079 = vand.u32 %v1067, 2147483648
      %v1080 = vor.u32 1.1754944e-38, %v1079
      %v1081 = vsel %vm1078, %v1080, %v1076
      %v1082 = vmul.f32 1.0, %v1081
      %v1083 = vrot.slane %v1032, 5
      %v1085 = vmul.f32 %v1026, %v1083
      %v1086 = vrot.slane %v1042, 4
      %v1088 = vmul.f32 %v1026, %v1086
      %v1090 = vrot.slane %v1088, 1
      %v1092 = vadd.f32 %v1085, %v1090
      %v1093 = vrot.slane %v1059, 4
      %v1095 = vmul.f32 %v1026, %v1093
      %v1097 = vrot.slane %v1095, 2
      %v1099 = vadd.f32 %v1092, %v1097
      %v1101 = vrot.slane %v1082, 4
      %v1103 = vmul.f32 %v1099, %v1101
      %v1104 = vrot.slane %v1019, 5
      %v1106 = vmul.f32 %v1026, %v1104
      %v1107 = vrot.slane %v1011, 3
      %v1109 = vmul.f32 %v1026, %v1107
      %v1111 = vrot.slane %v1109, 1
      %v1113 = vsub.f32 %v1106, %v1111
      %v1115 = vrot.slane %v1113, 5
      %v1117 = vmul.f32 %v483, %v1115
      %v1119 = vrot.slane %v1000, 3
      %v1121 = vmul.f32 %v1026, %v1119
      %v1122 = vrot.slane %v1019, 6
      %v1124 = vmul.f32 %v1026, %v1122
      %v1126 = vrot.slane %v1124, 6
      %v1128 = vsub.f32 %v1121, %v1126
      %v1130 = vrot.slane %v1128, 7
      %v1132 = vmul.f32 %v484, %v1130
      %v1134 = vrot.slane %v1132, 7
      %v1136 = vadd.f32 %v1117, %v1134
      %v1137 = vrot.slane %v1011, 5
      %v1139 = vmul.f32 %v1026, %v1137
      %v1140 = vrot.slane %v1000, 4
      %v1142 = vmul.f32 %v1026, %v1140
      %v1144 = vrot.slane %v1142, 1
      %v1146 = vsub.f32 %v1139, %v1144
      %v1148 = vrot.slane %v1146, 5
      %v1150 = vmul.f32 %v638, %v1148
      %v1152 = vrot.slane %v1150, 7
      %v1154 = vadd.f32 %v1136, %v1152
      %v1155 = vmul.f32 %v1154, %v1082
      %v1156 = vrot.slane %v483, 4
      %v1158 = vmul.f32 %v1103, %v1156
      %v1160 = vrot.slane %v1158, 3
      %v1162 = vadd.f32 %v277, %v1160
      %v1163 = vrot.slane %v484, 3
      %v1165 = vmul.f32 %v1103, %v1163
      %v1167 = vrot.slane %v1165, 2
      %v1169 = vadd.f32 %v277, %v1167
      %v1170 = vrot.slane %v638, 3
      %v1172 = vmul.f32 %v1103, %v1170
      %v1174 = vrot.slane %v1172, 1
      %v1176 = vadd.f32 %v277, %v1174
      %v1178 = vrot.slane %v836, 2
      %v1180 = vmul.f32 %v1155, %v1178
      %v1182 = vrot.slane %v1180, 4
      %v1184 = vadd.f32 %v277, %v1182
      %v1186 = vrot.slane %v837, 1
      %v1188 = vmul.f32 %v1155, %v1186
      %v1190 = vrot.slane %v1188, 3
      %v1192 = vadd.f32 %v277, %v1190
      %v1194 = vrot.slane %v991, 1
      %v1196 = vmul.f32 %v1155, %v1194
      %v1198 = vrot.slane %v1196, 2
      %v1200 = vadd.f32 %v277, %v1198
      %v1202 = vrot.slane %v1184, 3
      %v1204 = vadd.f32 %v1162, %v1202
      %v1205 = vmul.f32 %v1204, 0.5
      %v1207 = vrot.slane %v1192, 3
      %v1209 = vadd.f32 %v1169, %v1207
      %v1210 = vmul.f32 %v1209, 0.5
      %v1212 = vrot.slane %v1200, 3
      %v1214 = vadd.f32 %v1176, %v1212
      %v1215 = vmul.f32 %v1214, 0.5
      %v1216 = vsub.f32 %v1162, %v1202
      %v1217 = vsub.f32 %v1169, %v1207
      %v1218 = vsub.f32 %v1176, %v1212
      %v1219 = vmul.f32 %v1216, %v1216
      %v1220 = vmul.f32 %v1217, %v1217
      %v1222 = vrot.slane %v1220, 1
      %v1224 = vadd.f32 %v1219, %v1222
      %v1225 = vmul.f32 %v1218, %v1218
      %v1227 = vrot.slane %v1225, 2
      %v1229 = vadd.f32 %v1224, %v1227
      %v1230 = vrsqrt.pop %v1229
      %v1231 = vmul.f32 %v1230, %v1229
      %v1232 = vmul.f32 %v1231, %v1230
      %v1233 = vmul.f32 0.5, %v1232
      %v1234 = vsub.f32 1.5, %v1233
      %v1235 = vmul.f32 %v1230, %v1234
      %v1236 = vmul.f32 %v1229, %v1235
      %vm1237 = vcmp.eq.f32.partialorder %v1229, inf
      %v1238 = vsel %vm1237, %v1229, %v1236
      %vm1239 = vcmp.eq.f32.partialorder %v1229, 0.0
      %v1240 = vand.u32 %v1229, 2147483648
      %v1241 = vsel %vm1239, %v1240, %v1238
      %v1242 = vrot.slane %v638, 4
      %v1244 = vrot.slane %v836, 6
      %v1246 = vrot.slane %v837, 4
      %v1248 = vrot.slane %v991, 3
      %v1251 = vrot.slane %v1162, 2
      %v1254 = vrot.slane %v1169, 2
      %v1257 = vrot.slane %v1176, 2
      %v1259 = vrot.slane %v1184, 2
      %v1261 = vrot.slane %v1192, 2
      %v1263 = vrot.slane %v1200, 2
      %v1266 = vrot.slane %v1205, 4
      %v1269 = vrot.slane %v1210, 4
      %v1272 = vrot.slane %v1215, 4
      %v1275 = vrot.slane %v1241, 1
      %vm1277 = vcmask 1040384
      %v1278 = vsel %vm1277, %v1002, %v1012
      %vm1279 = vcmask 1041408
      %v1280 = vsel %vm1279, %v1278, %v1242
      %vm1281 = vcmask 1042432
      %v1282 = vsel %vm1281, %v1280, %v1244
      %vm1283 = vcmask 1043456
      %v1284 = vsel %vm1283, %v1282, %v1246
      %vm1285 = vcmask 1044480
      %v1286 = vsel %vm1285, %v1284, %v1248
      %vm1287 = vcmask 1045504
      %v1288 = vsel %vm1287, %v1286, %v1251
      %vm1289 = vcmask 1046528
      %v1290 = vsel %vm1289, %v1288, %v1254
      %v1291 = vsel %vm1277, %v1257, %v1259
      %v1292 = vsel %vm1279, %v1291, %v1261
      %v1293 = vsel %vm1281, %v1292, %v1263
      %v1294 = vsel %vm1283, %v1293, %v1266
      %v1295 = vsel %vm1285, %v1294, %v1269
      %v1296 = vsel %vm1287, %v1295, %v1272
      %v1297 = vsel %vm1289, %v1296, %v1275
      %1298 = vst.msk [vmem:[%s3] sm:$0xff] %vm257, %v277
      %1299 = vst.msk [vmem:[%s3 + $0x8] sm:$0xff] %vm257, %v278
      %1300 = vst.msk [vmem:[%s3 + $0x10] sm:$0xff] %vm257, %v1290
      %1301 = vst.msk [vmem:[%s3 + $0x18] sm:$0xff] %vm257, %v1297
    $region25: #{tpu_custom_call.1} parent=1 // pred_fallthru
      _
    // Predicated region
    $region26: #{tpu_custom_call.1} parent=1 // pred_check
      _
    $region27: #{tpu_custom_call.1} parent=1 // pred_check_branch
      %1303 = sbr.rel (0) target = $region29
    $region28: #{tpu_custom_call.1} parent=1 // pred_region
      _
    $region29: #{tpu_custom_call.1} parent=1 // pred_fallthru
      _
    // Predicated region
    $region30: #{tpu_custom_call.1} parent=1 // pred_check
      _
    $region31: #{tpu_custom_call.1} parent=1 // pred_check_branch
      %1305 = sbr.rel (0) target = $region33
    $region32: #{tpu_custom_call.1} parent=1 // pred_region
      _
    $region33: #{tpu_custom_call.1} parent=1 // pred_fallthru
      _
    %1306 = vsyncpa [#allocation4], 1

</llo_original>
